<compile_context>
chip_gen: v5e
topology: v5e:2x2
jax: 0.10.0
libtpu: 0.0.40
codegen_flags: <defaults>
</compile_context>

<pallas_src>
import functools

import numpy as np
import jax
import jax.numpy as jnp
from jax.experimental import pallas as pl
from jax.experimental.pallas import tpu as pltpu


def _round_up(n, m):
    return ((n + m - 1) // m) * m


@functools.lru_cache(maxsize=None)
def _dft_tables(N, Np):
    """Host-built, cached DFT trig tables (zero-padded to Np) and grids.

    wc[n, f] = cos(2*pi*n*f/N), ws[n, f] = -sin(2*pi*n*f/N)   (zero outside NxN)
    forward DFT of a real signal:  alpha_re = x @ wc,  alpha_im = x @ ws
    Re(iDFT(y)) (1/N folded into the G tables):  x1 = y_re @ wc + y_im @ ws
    """
    t = np.linspace(0.0, 1.0, N)
    dt = t[1] - t[0]
    omega = (2.0 * np.pi * np.fft.fftfreq(N, d=dt)).astype(np.float32)   # (N,)
    n = np.arange(N)
    theta = 2.0 * np.pi * np.outer(n, n) / N
    wc = np.zeros((Np, Np), np.float32)
    ws = np.zeros((Np, Np), np.float32)
    wc[:N, :N] = np.cos(theta)
    ws[:N, :N] = -np.sin(theta)
    return wc, ws, omega, t.astype(np.float32)


def _vmem_limit_bytes():
    cap = 128 * 1024 * 1024
    try:
        info = pltpu.get_tpu_info()
        cap = int(getattr(info, "vmem_capacity_bytes", cap))
    except Exception:
        pass
    # ~3/4 of physical VMEM (48 MiB on v7x), capped at 100 MiB on v5e/v6e.
    return int(min(cap * 3 // 4, 100 * 1024 * 1024))


def _pick_b_tile(B, I):
    """Batch tile: aim for ~256 MXU rows (B_TILE*I), keep >=2 grid steps."""
    bt = max(1, 256 // max(I, 1))
    bt = min(bt, B)
    if B >= 2:
        bt = min(bt, (B + 1) // 2)   # >=2 steps so both v7x TCs have work
    return bt


def _const_spec(shape):
    """BlockSpec for a grid-invariant table; single-buffered when supported."""
    nd = len(shape)
    idx = lambda bb, _nd=nd: (0,) * _nd
    try:
        return pl.BlockSpec(shape, idx, pipeline_mode=pl.Buffered(1))
    except Exception:
        return pl.BlockSpec(shape, idx)


def pr_kernel(x_ref, wc_ref, ws_ref, g_re_ref, g_im_ref,
              hwn_re_ref, hwn_im_ref, t_re_ref, t_im_ref, o_ref,
              *, B_TILE, I, O, Np):
    f32 = jnp.float32
    bf16 = jnp.bfloat16

    wc = wc_ref[...]                                        # (Np, Np) bf16
    ws = ws_ref[...]

    # ---- forward DFT: (B_TILE*I, Np) @ (Np, Np) per component on the MXU ----
    x2d = x_ref[...].reshape(B_TILE * I, Np).astype(bf16)
    alpha_re = jnp.dot(x2d, wc, preferred_element_type=f32)     # (B_TILE*I, Np)
    alpha_im = jnp.dot(x2d, ws, preferred_element_type=f32)

    a3_re = alpha_re.reshape(B_TILE, I, Np)
    a3_im = alpha_im.reshape(B_TILE, I, Np)
    slabs_re = [a3_re[:, i, :] for i in range(I)]               # I x (B_TILE, Np)
    slabs_im = [a3_im[:, i, :] for i in range(I)]

    # ---- or1[b,o,f] = sum_i alpha[b,i,f] * G[i,o,f]  (VPU; G carries 1/N) ----
    g_re = g_re_ref[...]                                        # (I*O, Np) f32
    g_im = g_im_ref[...]
    or1_re, or1_im = [], []
    for o in range(O):
        acc_re = jnp.zeros((B_TILE, Np), f32)
        acc_im = jnp.zeros((B_TILE, Np), f32)
        for i in range(I):
            r = i * O + o
            gr = g_re[r:r + 1, :]
            gi = g_im[r:r + 1, :]
            acc_re = acc_re + slabs_re[i] * gr - slabs_im[i] * gi
            acc_im = acc_im + slabs_re[i] * gi + slabs_im[i] * gr
        or1_re.append(acc_re)
        or1_im.append(acc_im)

    # ---- x1 = Re(iDFT(or1)): one (O*B_TILE, Np) @ (Np, Np) matmul pair ------
    or1_re_cat = jnp.concatenate(or1_re, axis=0).astype(bf16)   # (O*B_TILE, Np)
    or1_im_cat = jnp.concatenate(or1_im, axis=0).astype(bf16)
    x1_ob = (jnp.dot(or1_re_cat, wc, preferred_element_type=f32)
             + jnp.dot(or1_im_cat, ws, preferred_element_type=f32))
    x1_flat = jnp.concatenate(
        [x1_ob[o * B_TILE:(o + 1) * B_TILE, :] for o in range(O)], axis=1)

    # ---- or2[b,om] = sum_{i,f} alpha[b,i,f] * (-Hw)[i,f,om]: flattened MXU ---
    aflat_re = jnp.concatenate(slabs_re, axis=1).astype(bf16)   # (B_TILE, I*Np)
    aflat_im = jnp.concatenate(slabs_im, axis=1).astype(bf16)
    hwn_re = hwn_re_ref[...]                                    # (I*Np, O*M) bf16
    hwn_im = hwn_im_ref[...]
    or2_re = (jnp.dot(aflat_re, hwn_re, preferred_element_type=f32)
              - jnp.dot(aflat_im, hwn_im, preferred_element_type=f32))
    or2_im = (jnp.dot(aflat_re, hwn_im, preferred_element_type=f32)
              + jnp.dot(aflat_im, hwn_re, preferred_element_type=f32))

    # ---- x2 = Re(or2 @ term2) / N  (1/N folded into the t tables) -----------
    x2_flat = (jnp.dot(or2_re.astype(bf16), t_re_ref[...],
                       preferred_element_type=f32)
               - jnp.dot(or2_im.astype(bf16), t_im_ref[...],
                         preferred_element_type=f32))           # (B_TILE, O*Np)

    # ---- single lane-dense store ---------------------------------------------
    o_ref[0] = x1_flat + x2_flat


@jax.jit
def pr_forward(x, pole_re, pole_im, res_re, res_im):
    B, I, N = x.shape
    Ii, O, M = pole_re.shape
    assert Ii == I
    # The torch x2 einsum ('bix,ioxz->boz') aliases or2's out-channel with
    # term2's in-channel, which implicitly requires in_channels == out_channels.
    assert I == O, "PR forward requires in_channels == out_channels"

    Np = max(_round_up(N, 128), 128)
    wc_np, ws_np, omega_np, t_np = _dft_tables(N, Np)
    wc = jnp.asarray(wc_np, dtype=jnp.bfloat16)
    ws = jnp.asarray(ws_np, dtype=jnp.bfloat16)
    omega = jnp.asarray(omega_np)                               # (N,)
    tvec = jnp.asarray(t_np)                                    # (N,)

    # ---- x-independent prep (weights only), hoisted out of the kernel -------
    # Hw[i,o,m,f] = residue / (i*omega_f - pole)
    d_re = -pole_re[..., None]                                  # (I, O, M, 1)
    d_im = omega[None, None, None, :] - pole_im[..., None]      # (I, O, M, N)
    inv_dsq = 1.0 / (d_re * d_re + d_im * d_im + 1e-30)
    hw_re = (res_re[..., None] * d_re + res_im[..., None] * d_im) * inv_dsq
    hw_im = (res_im[..., None] * d_re - res_re[..., None] * d_im) * inv_dsq

    # G/N = (sum_m Hw)/N laid out (i*O + o, f), zero-padded along f (f32).
    g_re = (jnp.pad(jnp.sum(hw_re, axis=2), [(0, 0), (0, 0), (0, Np - N)])
            .reshape(I * O, Np) * (1.0 / N)).astype(jnp.float32)
    g_im = (jnp.pad(jnp.sum(hw_im, axis=2), [(0, 0), (0, 0), (0, Np - N)])
            .reshape(I * O, Np) * (1.0 / N)).astype(jnp.float32)

    # -Hw flattened to (i*Np + f, o*M + m) for the or2 matmul (bf16).
    pad_f = [(0, 0), (0, Np - N), (0, 0), (0, 0)]
    hwn_re = jnp.pad(-jnp.transpose(hw_re, (0, 3, 1, 2)), pad_f)
    hwn_im = jnp.pad(-jnp.transpose(hw_im, (0, 3, 1, 2)), pad_f)
    hwn_re = hwn_re.reshape(I * Np, O * M).astype(jnp.bfloat16)
    hwn_im = hwn_im.reshape(I * Np, O * M).astype(jnp.bfloat16)

    # term2/N = exp(pole*t)/N flattened to (c*M + m, o*Np + z) (bf16).
    a = pole_re[..., None] * tvec                               # (I, O, M, N)
    b = pole_im[..., None] * tvec
    ea = jnp.exp(a) * (1.0 / N)
    pad_z = [(0, 0), (0, 0), (0, 0), (0, Np - N)]
    t_re = jnp.pad(jnp.transpose(ea * jnp.cos(b), (0, 2, 1, 3)), pad_z)
    t_im = jnp.pad(jnp.transpose(ea * jnp.sin(b), (0, 2, 1, 3)), pad_z)
    t_re = t_re.reshape(I * M, O * Np).astype(jnp.bfloat16)
    t_im = t_im.reshape(I * M, O * Np).astype(jnp.bfloat16)

    # ---- batch tiling --------------------------------------------------------
    B_TILE = _pick_b_tile(B, I)
    nb = -(-B // B_TILE)
    Bp = nb * B_TILE
    x_pad = jnp.pad(x.astype(jnp.float32), [(0, Bp - B), (0, 0), (0, Np - N)])

    kernel = functools.partial(pr_kernel, B_TILE=B_TILE, I=I, O=O, Np=Np)

    out = pl.pallas_call(
        kernel,
        out_shape=jax.ShapeDtypeStruct((nb, B_TILE, O * Np), jnp.float32),
        grid=(nb,),
        in_specs=[
            pl.BlockSpec((B_TILE, I, Np), lambda bb: (bb, 0, 0)),  # x tile
            _const_spec((Np, Np)),            # cos table (fwd + inv DFT)
            _const_spec((Np, Np)),            # -sin table (fwd + inv DFT)
            _const_spec((I * O, Np)),         # G real / N
            _const_spec((I * O, Np)),         # G imag / N
            _const_spec((I * Np, O * M)),     # -Hw real
            _const_spec((I * Np, O * M)),     # -Hw imag
            _const_spec((I * M, O * Np)),     # term2 real / N
            _const_spec((I * M, O * Np)),     # term2 imag / N
        ],
        out_specs=pl.BlockSpec((1, B_TILE, O * Np), lambda bb: (bb, 0, 0)),
        compiler_params=pltpu.CompilerParams(
            dimension_semantics=("parallel",),
            vmem_limit_bytes=_vmem_limit_bytes()),
    )(x_pad, wc, ws, g_re, g_im, hwn_re, hwn_im, t_re, t_im)

    return out.reshape(Bp, O, Np)[:B, :, :N]


def pr_reference(x, pole_re, pole_im, res_re, res_im):
    """Pure-JAX reference matching the torch forward (uses complex FFTs)."""
    B, I, N = x.shape
    t = np.linspace(0.0, 1.0, N)
    dt = t[1] - t[0]
    omega = 2.0 * np.pi * np.fft.fftfreq(N, d=dt)
    lam = jnp.asarray(1j * omega, dtype=jnp.complex64)[:, None, None, None]
    pole = (pole_re + 1j * pole_im).astype(jnp.complex64)
    residue = (res_re + 1j * res_im).astype(jnp.complex64)

    alpha = jnp.fft.fft(x)                                # (B, I, N) complex
    Hw = residue / (lam - pole)                           # (N, I, O, M)
    or1 = jnp.einsum('bix,xiok->box', alpha, Hw)
    or2 = jnp.einsum('bix,xiok->bok', alpha, -Hw)
    x1 = jnp.real(jnp.fft.ifft(or1, n=N))
    term2 = jnp.exp(jnp.einsum('iom,z->iomz', pole,
                               jnp.asarray(t, dtype=jnp.complex64)))
    x2 = jnp.real(jnp.einsum('bcm,comz->boz', or2, term2)) / N
    return x1 + x2


if __name__ == "__main__":
    # Small shapes (original module uses h=972; here N=64 -> padded to 128).
    B, I, O, M, N = 2, 4, 4, 8, 64
    key = jax.random.PRNGKey(0)
    k1, k2, k3, k4, k5 = jax.random.split(key, 5)

    scale = 1.0 / (I * O)
    x = jax.random.normal(k1, (B, I, N), dtype=jnp.float32)
    # torch.rand(..., dtype=cfloat) -> uniform[0,1) real and imag parts, scaled.
    pole_re = scale * jax.random.uniform(k2, (I, O, M), dtype=jnp.float32)
    pole_im = scale * jax.random.uniform(k3, (I, O, M), dtype=jnp.float32)
    res_re = scale * jax.random.uniform(k4, (I, O, M), dtype=jnp.float32)
    res_im = scale * jax.random.uniform(k5, (I, O, M), dtype=jnp.float32)

    out = pr_forward(x, pole_re, pole_im, res_re, res_im)
    out = jax.block_until_ready(out)

    ref = pr_reference(x, pole_re, pole_im, res_re, res_im)
    err = float(jnp.max(jnp.abs(out - ref)))
    ref_scale = float(jnp.max(jnp.abs(ref))) + 1e-6
    assert err <= 2e-2 * ref_scale + 1e-3, f"mismatch: max_err={err}, ref_scale={ref_scale}"
    print("KERNEL_OK")
</pallas_src>

<mosaic_0001>
module attributes {stable_mosaic.version = 11 : i64} {
  func.func @pr_kernel(%arg0: i32, %arg1: memref<1x4x128xf32, #tpu.memory_space<vmem>>, %arg2: memref<128x128xbf16, #tpu.memory_space<vmem>>, %arg3: memref<128x128xbf16, #tpu.memory_space<vmem>>, %arg4: memref<16x128xf32, #tpu.memory_space<vmem>>, %arg5: memref<16x128xf32, #tpu.memory_space<vmem>>, %arg6: memref<512x32xbf16, #tpu.memory_space<vmem>>, %arg7: memref<512x32xbf16, #tpu.memory_space<vmem>>, %arg8: memref<32x512xbf16, #tpu.memory_space<vmem>>, %arg9: memref<32x512xbf16, #tpu.memory_space<vmem>>, %arg10: memref<1x1x512xf32, #tpu.memory_space<vmem>>) attributes {dimension_semantics = [#tpu.dimension_semantics<parallel>], iteration_bounds = array<i64: 2>, scalar_prefetch = 0 : i64, scratch_operands = 0 : i64, tpu.core_type = #tpu.core_type<tc>, window_params = [{transform_indices = @transform_0, window_bounds = array<i64: 1, 4, 128>}, {pipeline_mode = #tpu.pipeline_mode<synchronous>, transform_indices = @transform_1, window_bounds = array<i64: 128, 128>}, {pipeline_mode = #tpu.pipeline_mode<synchronous>, transform_indices = @transform_2, window_bounds = array<i64: 128, 128>}, {pipeline_mode = #tpu.pipeline_mode<synchronous>, transform_indices = @transform_3, window_bounds = array<i64: 16, 128>}, {pipeline_mode = #tpu.pipeline_mode<synchronous>, transform_indices = @transform_4, window_bounds = array<i64: 16, 128>}, {pipeline_mode = #tpu.pipeline_mode<synchronous>, transform_indices = @transform_5, window_bounds = array<i64: 512, 32>}, {pipeline_mode = #tpu.pipeline_mode<synchronous>, transform_indices = @transform_6, window_bounds = array<i64: 512, 32>}, {pipeline_mode = #tpu.pipeline_mode<synchronous>, transform_indices = @transform_7, window_bounds = array<i64: 32, 512>}, {pipeline_mode = #tpu.pipeline_mode<synchronous>, transform_indices = @transform_8, window_bounds = array<i64: 32, 512>}, {transform_indices = @transform_9, window_bounds = array<i64: 1, 1, 512>}]} {
    %c0 = arith.constant 0 : index
    %c0_0 = arith.constant 0 : index
    %0 = vector.load %arg2[%c0, %c0_0] : memref<128x128xbf16, #tpu.memory_space<vmem>>, vector<128x128xbf16>
    %c0_1 = arith.constant 0 : index
    %c0_2 = arith.constant 0 : index
    %1 = vector.load %arg3[%c0_1, %c0_2] : memref<128x128xbf16, #tpu.memory_space<vmem>>, vector<128x128xbf16>
    %c0_3 = arith.constant 0 : index
    %c0_4 = arith.constant 0 : index
    %c0_5 = arith.constant 0 : index
    %2 = vector.load %arg1[%c0_3, %c0_4, %c0_5] : memref<1x4x128xf32, #tpu.memory_space<vmem>>, vector<1x4x128xf32>
    %3 = vector.shape_cast %2 : vector<1x4x128xf32> to vector<4x128xf32>
    %4 = arith.truncf %3 : vector<4x128xf32> to vector<4x128xbf16>
    %cst = arith.constant dense<0.000000e+00> : vector<4x128xf32>
    %5 = tpu.matmul %4, %0, %cst {dimension_numbers = #tpu.dot_dimension_numbers<[1], [0], [0], [1], [0, 0, 1, 1], [], []>} : vector<4x128xbf16>, vector<128x128xbf16>, vector<4x128xf32> -> vector<4x128xf32>
    %cst_6 = arith.constant dense<0.000000e+00> : vector<4x128xf32>
    %6 = tpu.matmul %4, %1, %cst_6 {dimension_numbers = #tpu.dot_dimension_numbers<[1], [0], [0], [1], [0, 0, 1, 1], [], []>} : vector<4x128xbf16>, vector<128x128xbf16>, vector<4x128xf32> -> vector<4x128xf32>
    %7 = vector.shape_cast %5 : vector<4x128xf32> to vector<1x4x128xf32>
    %8 = vector.shape_cast %6 : vector<4x128xf32> to vector<1x4x128xf32>
    %9 = vector.extract_strided_slice %7 {offsets = [0, 0, 0], sizes = [1, 1, 128], strides = [1, 1, 1]} : vector<1x4x128xf32> to vector<1x1x128xf32>
    %10 = vector.shape_cast %9 : vector<1x1x128xf32> to vector<1x128xf32>
    %11 = vector.extract_strided_slice %7 {offsets = [0, 1, 0], sizes = [1, 1, 128], strides = [1, 1, 1]} : vector<1x4x128xf32> to vector<1x1x128xf32>
    %12 = vector.shape_cast %11 : vector<1x1x128xf32> to vector<1x128xf32>
    %13 = vector.extract_strided_slice %7 {offsets = [0, 2, 0], sizes = [1, 1, 128], strides = [1, 1, 1]} : vector<1x4x128xf32> to vector<1x1x128xf32>
    %14 = vector.shape_cast %13 : vector<1x1x128xf32> to vector<1x128xf32>
    %15 = vector.extract_strided_slice %7 {offsets = [0, 3, 0], sizes = [1, 1, 128], strides = [1, 1, 1]} : vector<1x4x128xf32> to vector<1x1x128xf32>
    %16 = vector.shape_cast %15 : vector<1x1x128xf32> to vector<1x128xf32>
    %17 = vector.extract_strided_slice %8 {offsets = [0, 0, 0], sizes = [1, 1, 128], strides = [1, 1, 1]} : vector<1x4x128xf32> to vector<1x1x128xf32>
    %18 = vector.shape_cast %17 : vector<1x1x128xf32> to vector<1x128xf32>
    %19 = vector.extract_strided_slice %8 {offsets = [0, 1, 0], sizes = [1, 1, 128], strides = [1, 1, 1]} : vector<1x4x128xf32> to vector<1x1x128xf32>
    %20 = vector.shape_cast %19 : vector<1x1x128xf32> to vector<1x128xf32>
    %21 = vector.extract_strided_slice %8 {offsets = [0, 2, 0], sizes = [1, 1, 128], strides = [1, 1, 1]} : vector<1x4x128xf32> to vector<1x1x128xf32>
    %22 = vector.shape_cast %21 : vector<1x1x128xf32> to vector<1x128xf32>
    %23 = vector.extract_strided_slice %8 {offsets = [0, 3, 0], sizes = [1, 1, 128], strides = [1, 1, 1]} : vector<1x4x128xf32> to vector<1x1x128xf32>
    %24 = vector.shape_cast %23 : vector<1x1x128xf32> to vector<1x128xf32>
    %c0_7 = arith.constant 0 : index
    %c0_8 = arith.constant 0 : index
    %25 = vector.load %arg4[%c0_7, %c0_8] : memref<16x128xf32, #tpu.memory_space<vmem>>, vector<16x128xf32>
    %c0_9 = arith.constant 0 : index
    %c0_10 = arith.constant 0 : index
    %26 = vector.load %arg5[%c0_9, %c0_10] : memref<16x128xf32, #tpu.memory_space<vmem>>, vector<16x128xf32>
    %cst_11 = arith.constant 0.000000e+00 : f32
    %27 = vector.broadcast %cst_11 : f32 to vector<1x128xf32>
    %cst_12 = arith.constant 0.000000e+00 : f32
    %28 = vector.broadcast %cst_12 : f32 to vector<1x128xf32>
    %29 = vector.extract_strided_slice %25 {offsets = [0, 0], sizes = [1, 128], strides = [1, 1]} : vector<16x128xf32> to vector<1x128xf32>
    %30 = vector.extract_strided_slice %26 {offsets = [0, 0], sizes = [1, 128], strides = [1, 1]} : vector<16x128xf32> to vector<1x128xf32>
    %31 = arith.mulf %10, %29 : vector<1x128xf32>
    %32 = arith.addf %27, %31 : vector<1x128xf32>
    %33 = arith.mulf %18, %30 : vector<1x128xf32>
    %34 = arith.subf %32, %33 : vector<1x128xf32>
    %35 = arith.mulf %10, %30 : vector<1x128xf32>
    %36 = arith.addf %28, %35 : vector<1x128xf32>
    %37 = arith.mulf %18, %29 : vector<1x128xf32>
    %38 = arith.addf %36, %37 : vector<1x128xf32>
    %39 = vector.extract_strided_slice %25 {offsets = [4, 0], sizes = [1, 128], strides = [1, 1]} : vector<16x128xf32> to vector<1x128xf32>
    %40 = vector.extract_strided_slice %26 {offsets = [4, 0], sizes = [1, 128], strides = [1, 1]} : vector<16x128xf32> to vector<1x128xf32>
    %41 = arith.mulf %12, %39 : vector<1x128xf32>
    %42 = arith.addf %34, %41 : vector<1x128xf32>
    %43 = arith.mulf %20, %40 : vector<1x128xf32>
    %44 = arith.subf %42, %43 : vector<1x128xf32>
    %45 = arith.mulf %12, %40 : vector<1x128xf32>
    %46 = arith.addf %38, %45 : vector<1x128xf32>
    %47 = arith.mulf %20, %39 : vector<1x128xf32>
    %48 = arith.addf %46, %47 : vector<1x128xf32>
    %49 = vector.extract_strided_slice %25 {offsets = [8, 0], sizes = [1, 128], strides = [1, 1]} : vector<16x128xf32> to vector<1x128xf32>
    %50 = vector.extract_strided_slice %26 {offsets = [8, 0], sizes = [1, 128], strides = [1, 1]} : vector<16x128xf32> to vector<1x128xf32>
    %51 = arith.mulf %14, %49 : vector<1x128xf32>
    %52 = arith.addf %44, %51 : vector<1x128xf32>
    %53 = arith.mulf %22, %50 : vector<1x128xf32>
    %54 = arith.subf %52, %53 : vector<1x128xf32>
    %55 = arith.mulf %14, %50 : vector<1x128xf32>
    %56 = arith.addf %48, %55 : vector<1x128xf32>
    %57 = arith.mulf %22, %49 : vector<1x128xf32>
    %58 = arith.addf %56, %57 : vector<1x128xf32>
    %59 = vector.extract_strided_slice %25 {offsets = [12, 0], sizes = [1, 128], strides = [1, 1]} : vector<16x128xf32> to vector<1x128xf32>
    %60 = vector.extract_strided_slice %26 {offsets = [12, 0], sizes = [1, 128], strides = [1, 1]} : vector<16x128xf32> to vector<1x128xf32>
    %61 = arith.mulf %16, %59 : vector<1x128xf32>
    %62 = arith.addf %54, %61 : vector<1x128xf32>
    %63 = arith.mulf %24, %60 : vector<1x128xf32>
    %64 = arith.subf %62, %63 : vector<1x128xf32>
    %65 = arith.mulf %16, %60 : vector<1x128xf32>
    %66 = arith.addf %58, %65 : vector<1x128xf32>
    %67 = arith.mulf %24, %59 : vector<1x128xf32>
    %68 = arith.addf %66, %67 : vector<1x128xf32>
    %cst_13 = arith.constant 0.000000e+00 : f32
    %69 = vector.broadcast %cst_13 : f32 to vector<1x128xf32>
    %cst_14 = arith.constant 0.000000e+00 : f32
    %70 = vector.broadcast %cst_14 : f32 to vector<1x128xf32>
    %71 = vector.extract_strided_slice %25 {offsets = [1, 0], sizes = [1, 128], strides = [1, 1]} : vector<16x128xf32> to vector<1x128xf32>
    %72 = vector.extract_strided_slice %26 {offsets = [1, 0], sizes = [1, 128], strides = [1, 1]} : vector<16x128xf32> to vector<1x128xf32>
    %73 = arith.mulf %10, %71 : vector<1x128xf32>
    %74 = arith.addf %69, %73 : vector<1x128xf32>
    %75 = arith.mulf %18, %72 : vector<1x128xf32>
    %76 = arith.subf %74, %75 : vector<1x128xf32>
    %77 = arith.mulf %10, %72 : vector<1x128xf32>
    %78 = arith.addf %70, %77 : vector<1x128xf32>
    %79 = arith.mulf %18, %71 : vector<1x128xf32>
    %80 = arith.addf %78, %79 : vector<1x128xf32>
    %81 = vector.extract_strided_slice %25 {offsets = [5, 0], sizes = [1, 128], strides = [1, 1]} : vector<16x128xf32> to vector<1x128xf32>
    %82 = vector.extract_strided_slice %26 {offsets = [5, 0], sizes = [1, 128], strides = [1, 1]} : vector<16x128xf32> to vector<1x128xf32>
    %83 = arith.mulf %12, %81 : vector<1x128xf32>
    %84 = arith.addf %76, %83 : vector<1x128xf32>
    %85 = arith.mulf %20, %82 : vector<1x128xf32>
    %86 = arith.subf %84, %85 : vector<1x128xf32>
    %87 = arith.mulf %12, %82 : vector<1x128xf32>
    %88 = arith.addf %80, %87 : vector<1x128xf32>
    %89 = arith.mulf %20, %81 : vector<1x128xf32>
    %90 = arith.addf %88, %89 : vector<1x128xf32>
    %91 = vector.extract_strided_slice %25 {offsets = [9, 0], sizes = [1, 128], strides = [1, 1]} : vector<16x128xf32> to vector<1x128xf32>
    %92 = vector.extract_strided_slice %26 {offsets = [9, 0], sizes = [1, 128], strides = [1, 1]} : vector<16x128xf32> to vector<1x128xf32>
    %93 = arith.mulf %14, %91 : vector<1x128xf32>
    %94 = arith.addf %86, %93 : vector<1x128xf32>
    %95 = arith.mulf %22, %92 : vector<1x128xf32>
    %96 = arith.subf %94, %95 : vector<1x128xf32>
    %97 = arith.mulf %14, %92 : vector<1x128xf32>
    %98 = arith.addf %90, %97 : vector<1x128xf32>
    %99 = arith.mulf %22, %91 : vector<1x128xf32>
    %100 = arith.addf %98, %99 : vector<1x128xf32>
    %101 = vector.extract_strided_slice %25 {offsets = [13, 0], sizes = [1, 128], strides = [1, 1]} : vector<16x128xf32> to vector<1x128xf32>
    %102 = vector.extract_strided_slice %26 {offsets = [13, 0], sizes = [1, 128], strides = [1, 1]} : vector<16x128xf32> to vector<1x128xf32>
    %103 = arith.mulf %16, %101 : vector<1x128xf32>
    %104 = arith.addf %96, %103 : vector<1x128xf32>
    %105 = arith.mulf %24, %102 : vector<1x128xf32>
    %106 = arith.subf %104, %105 : vector<1x128xf32>
    %107 = arith.mulf %16, %102 : vector<1x128xf32>
    %108 = arith.addf %100, %107 : vector<1x128xf32>
    %109 = arith.mulf %24, %101 : vector<1x128xf32>
    %110 = arith.addf %108, %109 : vector<1x128xf32>
    %cst_15 = arith.constant 0.000000e+00 : f32
    %111 = vector.broadcast %cst_15 : f32 to vector<1x128xf32>
    %cst_16 = arith.constant 0.000000e+00 : f32
    %112 = vector.broadcast %cst_16 : f32 to vector<1x128xf32>
    %113 = vector.extract_strided_slice %25 {offsets = [2, 0], sizes = [1, 128], strides = [1, 1]} : vector<16x128xf32> to vector<1x128xf32>
    %114 = vector.extract_strided_slice %26 {offsets = [2, 0], sizes = [1, 128], strides = [1, 1]} : vector<16x128xf32> to vector<1x128xf32>
    %115 = arith.mulf %10, %113 : vector<1x128xf32>
    %116 = arith.addf %111, %115 : vector<1x128xf32>
    %117 = arith.mulf %18, %114 : vector<1x128xf32>
    %118 = arith.subf %116, %117 : vector<1x128xf32>
    %119 = arith.mulf %10, %114 : vector<1x128xf32>
    %120 = arith.addf %112, %119 : vector<1x128xf32>
    %121 = arith.mulf %18, %113 : vector<1x128xf32>
    %122 = arith.addf %120, %121 : vector<1x128xf32>
    %123 = vector.extract_strided_slice %25 {offsets = [6, 0], sizes = [1, 128], strides = [1, 1]} : vector<16x128xf32> to vector<1x128xf32>
    %124 = vector.extract_strided_slice %26 {offsets = [6, 0], sizes = [1, 128], strides = [1, 1]} : vector<16x128xf32> to vector<1x128xf32>
    %125 = arith.mulf %12, %123 : vector<1x128xf32>
    %126 = arith.addf %118, %125 : vector<1x128xf32>
    %127 = arith.mulf %20, %124 : vector<1x128xf32>
    %128 = arith.subf %126, %127 : vector<1x128xf32>
    %129 = arith.mulf %12, %124 : vector<1x128xf32>
    %130 = arith.addf %122, %129 : vector<1x128xf32>
    %131 = arith.mulf %20, %123 : vector<1x128xf32>
    %132 = arith.addf %130, %131 : vector<1x128xf32>
    %133 = vector.extract_strided_slice %25 {offsets = [10, 0], sizes = [1, 128], strides = [1, 1]} : vector<16x128xf32> to vector<1x128xf32>
    %134 = vector.extract_strided_slice %26 {offsets = [10, 0], sizes = [1, 128], strides = [1, 1]} : vector<16x128xf32> to vector<1x128xf32>
    %135 = arith.mulf %14, %133 : vector<1x128xf32>
    %136 = arith.addf %128, %135 : vector<1x128xf32>
    %137 = arith.mulf %22, %134 : vector<1x128xf32>
    %138 = arith.subf %136, %137 : vector<1x128xf32>
    %139 = arith.mulf %14, %134 : vector<1x128xf32>
    %140 = arith.addf %132, %139 : vector<1x128xf32>
    %141 = arith.mulf %22, %133 : vector<1x128xf32>
    %142 = arith.addf %140, %141 : vector<1x128xf32>
    %143 = vector.extract_strided_slice %25 {offsets = [14, 0], sizes = [1, 128], strides = [1, 1]} : vector<16x128xf32> to vector<1x128xf32>
    %144 = vector.extract_strided_slice %26 {offsets = [14, 0], sizes = [1, 128], strides = [1, 1]} : vector<16x128xf32> to vector<1x128xf32>
    %145 = arith.mulf %16, %143 : vector<1x128xf32>
    %146 = arith.addf %138, %145 : vector<1x128xf32>
    %147 = arith.mulf %24, %144 : vector<1x128xf32>
    %148 = arith.subf %146, %147 : vector<1x128xf32>
    %149 = arith.mulf %16, %144 : vector<1x128xf32>
    %150 = arith.addf %142, %149 : vector<1x128xf32>
    %151 = arith.mulf %24, %143 : vector<1x128xf32>
    %152 = arith.addf %150, %151 : vector<1x128xf32>
    %cst_17 = arith.constant 0.000000e+00 : f32
    %153 = vector.broadcast %cst_17 : f32 to vector<1x128xf32>
    %cst_18 = arith.constant 0.000000e+00 : f32
    %154 = vector.broadcast %cst_18 : f32 to vector<1x128xf32>
    %155 = vector.extract_strided_slice %25 {offsets = [3, 0], sizes = [1, 128], strides = [1, 1]} : vector<16x128xf32> to vector<1x128xf32>
    %156 = vector.extract_strided_slice %26 {offsets = [3, 0], sizes = [1, 128], strides = [1, 1]} : vector<16x128xf32> to vector<1x128xf32>
    %157 = arith.mulf %10, %155 : vector<1x128xf32>
    %158 = arith.addf %153, %157 : vector<1x128xf32>
    %159 = arith.mulf %18, %156 : vector<1x128xf32>
    %160 = arith.subf %158, %159 : vector<1x128xf32>
    %161 = arith.mulf %10, %156 : vector<1x128xf32>
    %162 = arith.addf %154, %161 : vector<1x128xf32>
    %163 = arith.mulf %18, %155 : vector<1x128xf32>
    %164 = arith.addf %162, %163 : vector<1x128xf32>
    %165 = vector.extract_strided_slice %25 {offsets = [7, 0], sizes = [1, 128], strides = [1, 1]} : vector<16x128xf32> to vector<1x128xf32>
    %166 = vector.extract_strided_slice %26 {offsets = [7, 0], sizes = [1, 128], strides = [1, 1]} : vector<16x128xf32> to vector<1x128xf32>
    %167 = arith.mulf %12, %165 : vector<1x128xf32>
    %168 = arith.addf %160, %167 : vector<1x128xf32>
    %169 = arith.mulf %20, %166 : vector<1x128xf32>
    %170 = arith.subf %168, %169 : vector<1x128xf32>
    %171 = arith.mulf %12, %166 : vector<1x128xf32>
    %172 = arith.addf %164, %171 : vector<1x128xf32>
    %173 = arith.mulf %20, %165 : vector<1x128xf32>
    %174 = arith.addf %172, %173 : vector<1x128xf32>
    %175 = vector.extract_strided_slice %25 {offsets = [11, 0], sizes = [1, 128], strides = [1, 1]} : vector<16x128xf32> to vector<1x128xf32>
    %176 = vector.extract_strided_slice %26 {offsets = [11, 0], sizes = [1, 128], strides = [1, 1]} : vector<16x128xf32> to vector<1x128xf32>
    %177 = arith.mulf %14, %175 : vector<1x128xf32>
    %178 = arith.addf %170, %177 : vector<1x128xf32>
    %179 = arith.mulf %22, %176 : vector<1x128xf32>
    %180 = arith.subf %178, %179 : vector<1x128xf32>
    %181 = arith.mulf %14, %176 : vector<1x128xf32>
    %182 = arith.addf %174, %181 : vector<1x128xf32>
    %183 = arith.mulf %22, %175 : vector<1x128xf32>
    %184 = arith.addf %182, %183 : vector<1x128xf32>
    %185 = vector.extract_strided_slice %25 {offsets = [15, 0], sizes = [1, 128], strides = [1, 1]} : vector<16x128xf32> to vector<1x128xf32>
    %186 = vector.extract_strided_slice %26 {offsets = [15, 0], sizes = [1, 128], strides = [1, 1]} : vector<16x128xf32> to vector<1x128xf32>
    %187 = arith.mulf %16, %185 : vector<1x128xf32>
    %188 = arith.addf %180, %187 : vector<1x128xf32>
    %189 = arith.mulf %24, %186 : vector<1x128xf32>
    %190 = arith.subf %188, %189 : vector<1x128xf32>
    %191 = arith.mulf %16, %186 : vector<1x128xf32>
    %192 = arith.addf %184, %191 : vector<1x128xf32>
    %193 = arith.mulf %24, %185 : vector<1x128xf32>
    %194 = arith.addf %192, %193 : vector<1x128xf32>
    %195 = tpu.concatenate %64, %106, %148, %190 in 0 : vector<1x128xf32>, vector<1x128xf32>, vector<1x128xf32>, vector<1x128xf32> -> vector<4x128xf32>
    %196 = arith.truncf %195 : vector<4x128xf32> to vector<4x128xbf16>
    %197 = tpu.concatenate %68, %110, %152, %194 in 0 : vector<1x128xf32>, vector<1x128xf32>, vector<1x128xf32>, vector<1x128xf32> -> vector<4x128xf32>
    %198 = arith.truncf %197 : vector<4x128xf32> to vector<4x128xbf16>
    %cst_19 = arith.constant dense<0.000000e+00> : vector<4x128xf32>
    %199 = tpu.matmul %196, %0, %cst_19 {dimension_numbers = #tpu.dot_dimension_numbers<[1], [0], [0], [1], [0, 0, 1, 1], [], []>} : vector<4x128xbf16>, vector<128x128xbf16>, vector<4x128xf32> -> vector<4x128xf32>
    %cst_20 = arith.constant dense<0.000000e+00> : vector<4x128xf32>
    %200 = tpu.matmul %198, %1, %cst_20 {dimension_numbers = #tpu.dot_dimension_numbers<[1], [0], [0], [1], [0, 0, 1, 1], [], []>} : vector<4x128xbf16>, vector<128x128xbf16>, vector<4x128xf32> -> vector<4x128xf32>
    %201 = arith.addf %199, %200 : vector<4x128xf32>
    %202 = vector.extract_strided_slice %201 {offsets = [0, 0], sizes = [1, 128], strides = [1, 1]} : vector<4x128xf32> to vector<1x128xf32>
    %203 = vector.extract_strided_slice %201 {offsets = [1, 0], sizes = [1, 128], strides = [1, 1]} : vector<4x128xf32> to vector<1x128xf32>
    %204 = vector.extract_strided_slice %201 {offsets = [2, 0], sizes = [1, 128], strides = [1, 1]} : vector<4x128xf32> to vector<1x128xf32>
    %205 = vector.extract_strided_slice %201 {offsets = [3, 0], sizes = [1, 128], strides = [1, 1]} : vector<4x128xf32> to vector<1x128xf32>
    %206 = tpu.concatenate %202, %203, %204, %205 in 1 : vector<1x128xf32>, vector<1x128xf32>, vector<1x128xf32>, vector<1x128xf32> -> vector<1x512xf32>
    %207 = tpu.concatenate %10, %12, %14, %16 in 1 : vector<1x128xf32>, vector<1x128xf32>, vector<1x128xf32>, vector<1x128xf32> -> vector<1x512xf32>
    %208 = arith.truncf %207 : vector<1x512xf32> to vector<1x512xbf16>
    %209 = tpu.concatenate %18, %20, %22, %24 in 1 : vector<1x128xf32>, vector<1x128xf32>, vector<1x128xf32>, vector<1x128xf32> -> vector<1x512xf32>
    %210 = arith.truncf %209 : vector<1x512xf32> to vector<1x512xbf16>
    %c0_21 = arith.constant 0 : index
    %c0_22 = arith.constant 0 : index
    %211 = vector.load %arg6[%c0_21, %c0_22] : memref<512x32xbf16, #tpu.memory_space<vmem>>, vector<512x32xbf16>
    %c0_23 = arith.constant 0 : index
    %c0_24 = arith.constant 0 : index
    %212 = vector.load %arg7[%c0_23, %c0_24] : memref<512x32xbf16, #tpu.memory_space<vmem>>, vector<512x32xbf16>
    %cst_25 = arith.constant dense<0.000000e+00> : vector<1x32xf32>
    %213 = tpu.matmul %208, %211, %cst_25 {dimension_numbers = #tpu.dot_dimension_numbers<[1], [0], [0], [1], [0, 0, 1, 1], [], []>} : vector<1x512xbf16>, vector<512x32xbf16>, vector<1x32xf32> -> vector<1x32xf32>
    %cst_26 = arith.constant dense<0.000000e+00> : vector<1x32xf32>
    %214 = tpu.matmul %210, %212, %cst_26 {dimension_numbers = #tpu.dot_dimension_numbers<[1], [0], [0], [1], [0, 0, 1, 1], [], []>} : vector<1x512xbf16>, vector<512x32xbf16>, vector<1x32xf32> -> vector<1x32xf32>
    %215 = arith.subf %213, %214 : vector<1x32xf32>
    %cst_27 = arith.constant dense<0.000000e+00> : vector<1x32xf32>
    %216 = tpu.matmul %208, %212, %cst_27 {dimension_numbers = #tpu.dot_dimension_numbers<[1], [0], [0], [1], [0, 0, 1, 1], [], []>} : vector<1x512xbf16>, vector<512x32xbf16>, vector<1x32xf32> -> vector<1x32xf32>
    %cst_28 = arith.constant dense<0.000000e+00> : vector<1x32xf32>
    %217 = tpu.matmul %210, %211, %cst_28 {dimension_numbers = #tpu.dot_dimension_numbers<[1], [0], [0], [1], [0, 0, 1, 1], [], []>} : vector<1x512xbf16>, vector<512x32xbf16>, vector<1x32xf32> -> vector<1x32xf32>
    %218 = arith.addf %216, %217 : vector<1x32xf32>
    %219 = arith.truncf %215 : vector<1x32xf32> to vector<1x32xbf16>
    %c0_29 = arith.constant 0 : index
    %c0_30 = arith.constant 0 : index
    %220 = vector.load %arg8[%c0_29, %c0_30] : memref<32x512xbf16, #tpu.memory_space<vmem>>, vector<32x512xbf16>
    %cst_31 = arith.constant dense<0.000000e+00> : vector<1x512xf32>
    %221 = tpu.matmul %219, %220, %cst_31 {dimension_numbers = #tpu.dot_dimension_numbers<[1], [0], [0], [1], [0, 0, 1, 1], [], []>} : vector<1x32xbf16>, vector<32x512xbf16>, vector<1x512xf32> -> vector<1x512xf32>
    %222 = arith.truncf %218 : vector<1x32xf32> to vector<1x32xbf16>
    %c0_32 = arith.constant 0 : index
    %c0_33 = arith.constant 0 : index
    %223 = vector.load %arg9[%c0_32, %c0_33] : memref<32x512xbf16, #tpu.memory_space<vmem>>, vector<32x512xbf16>
    %cst_34 = arith.constant dense<0.000000e+00> : vector<1x512xf32>
    %224 = tpu.matmul %222, %223, %cst_34 {dimension_numbers = #tpu.dot_dimension_numbers<[1], [0], [0], [1], [0, 0, 1, 1], [], []>} : vector<1x32xbf16>, vector<32x512xbf16>, vector<1x512xf32> -> vector<1x512xf32>
    %225 = arith.subf %221, %224 : vector<1x512xf32>
    %226 = arith.addf %206, %225 : vector<1x512xf32>
    %c0_35 = arith.constant 0 : index
    %c0_36 = arith.constant 0 : index
    %c0_37 = arith.constant 0 : index
    %227 = vector.load %arg10[%c0_35, %c0_36, %c0_37] : memref<1x1x512xf32, #tpu.memory_space<vmem>>, vector<1x1x512xf32>
    %228 = vector.shape_cast %227 : vector<1x1x512xf32> to vector<1x512xf32>
    %229 = vector.shape_cast %226 : vector<1x512xf32> to vector<1x1x512xf32>
    tpu.vector_store %arg10[%c0_35, %c0_36, %c0_37], %229 {strides = array<i32>} : memref<1x1x512xf32, #tpu.memory_space<vmem>>, vector<1x1x512xf32>,
    return
  }
  func.func @transform_0(%arg0: i32) -> (i32, i32, i32) {
    %c0_i32 = arith.constant 0 : i32
    %c0_i32_0 = arith.constant 0 : i32
    %c0_i32_1 = arith.constant 0 : i32
    return %arg0, %c0_i32, %c0_i32_0 : i32, i32, i32
  }
  func.func @transform_1(%arg0: i32) -> (i32, i32) {
    %c0_i32 = arith.constant 0 : i32
    %c0_i32_0 = arith.constant 0 : i32
    %c0_i32_1 = arith.constant 0 : i32
    return %c0_i32, %c0_i32_0 : i32, i32
  }
  func.func @transform_2(%arg0: i32) -> (i32, i32) {
    %c0_i32 = arith.constant 0 : i32
    %c0_i32_0 = arith.constant 0 : i32
    %c0_i32_1 = arith.constant 0 : i32
    return %c0_i32, %c0_i32_0 : i32, i32
  }
  func.func @transform_3(%arg0: i32) -> (i32, i32) {
    %c0_i32 = arith.constant 0 : i32
    %c0_i32_0 = arith.constant 0 : i32
    %c0_i32_1 = arith.constant 0 : i32
    return %c0_i32, %c0_i32_0 : i32, i32
  }
  func.func @transform_4(%arg0: i32) -> (i32, i32) {
    %c0_i32 = arith.constant 0 : i32
    %c0_i32_0 = arith.constant 0 : i32
    %c0_i32_1 = arith.constant 0 : i32
    return %c0_i32, %c0_i32_0 : i32, i32
  }
  func.func @transform_5(%arg0: i32) -> (i32, i32) {
    %c0_i32 = arith.constant 0 : i32
    %c0_i32_0 = arith.constant 0 : i32
    %c0_i32_1 = arith.constant 0 : i32
    return %c0_i32, %c0_i32_0 : i32, i32
  }
  func.func @transform_6(%arg0: i32) -> (i32, i32) {
    %c0_i32 = arith.constant 0 : i32
    %c0_i32_0 = arith.constant 0 : i32
    %c0_i32_1 = arith.constant 0 : i32
    return %c0_i32, %c0_i32_0 : i32, i32
  }
  func.func @transform_7(%arg0: i32) -> (i32, i32) {
    %c0_i32 = arith.constant 0 : i32
    %c0_i32_0 = arith.constant 0 : i32
    %c0_i32_1 = arith.constant 0 : i32
    return %c0_i32, %c0_i32_0 : i32, i32
  }
  func.func @transform_8(%arg0: i32) -> (i32, i32) {
    %c0_i32 = arith.constant 0 : i32
    %c0_i32_0 = arith.constant 0 : i32
    %c0_i32_1 = arith.constant 0 : i32
    return %c0_i32, %c0_i32_0 : i32, i32
  }
  func.func @transform_9(%arg0: i32) -> (i32, i32, i32) {
    %c0_i32 = arith.constant 0 : i32
    %c0_i32_0 = arith.constant 0 : i32
    %c0_i32_1 = arith.constant 0 : i32
    return %arg0, %c0_i32, %c0_i32_0 : i32, i32, i32
  }
}

</mosaic_0001>

<llo_original>
// kernel: pr_forward.1
$region0: #{pr_forward.1}
  #allocation0 [shape = 'u32[]', space=smem, size = 0x4, offset = 0x4, fixed_abs, tag = 'smem constant byte address 0x4 - core index']
  #allocation1 [shape = 'u32[72,128]{1,0:T(1,128)}', space=vmem, size = 0x9000, scoped, tag = 'internal scratch']
  %s0 = inlined_call_operand.vmem [shape: f32[2,4,128], index: 0, kind: input, shape index: {}]
  %s1 = inlined_call_operand.vmem [shape: bf16[128,128], index: 1, kind: input, shape index: {}]
  %s2 = inlined_call_operand.vmem [shape: bf16[128,128], index: 2, kind: input, shape index: {}]
  %s3 = inlined_call_operand.vmem [shape: f32[16,128], index: 3, kind: input, shape index: {}]
  %s4 = inlined_call_operand.vmem [shape: f32[16,128], index: 4, kind: input, shape index: {}]
  %s5 = inlined_call_operand.vmem [shape: bf16[512,32], index: 5, kind: input, shape index: {}]
  %s6 = inlined_call_operand.vmem [shape: bf16[512,32], index: 6, kind: input, shape index: {}]
  %s7 = inlined_call_operand.vmem [shape: bf16[32,512], index: 7, kind: input, shape index: {}]
  %s8 = inlined_call_operand.vmem [shape: bf16[32,512], index: 8, kind: input, shape index: {}]
  %s9 = inlined_call_operand.hbm [shape: f32[2,1,512], index: 9, kind: output, shape index: {}]
  %s10 = sld [smem:[#allocation0]]
  $region69: #{pr_forward.1} parent=0
    _
  %s12 = ssub.s32 1, %s10
  %s13 = scalar_select 0, %s12, %s10
  $region1: #{pr_forward.1} parent=0
    #allocation2 [shape = 'u8[4096]{0}', space=vmem, size = 0x1000, scoped, tag = 'output window, operand 0']
    #allocation3 [shape = 's32[2]{0}', space=sflag, size = 0x8, scoped, tag = 'scoped memory for pr_forward.1']
    %14 = vsyncpa [#allocation3], 0
    %s15 = scalar_lea.sflag [#allocation3], 1
    %16 = vsyncpa %s15, 0
    loop: start=0, step=1, limit=4
    $region2: #{pr_forward.1} parent=1 // loop_pre_header
      _
    $region3: #{pr_forward.1} parent=1 // loop_header
      %s18 = sphi 0, %s22
      %p19 = scmp.ge.s32.totalorder %s18, 4
      %s28 = sphi 0, %s30
      %s31 = sphi 0, %s28
      %s32 = sphi 0, %s31
      %s48 = sphi 0, %s32
      %s52 = sphi 0, %s52
      %s54 = sphi 0, %s52
      %s55 = sphi 0, %s54
      %s69 = sphi 0, %s55
      %s73 = sphi 0, %s73
      %s75 = sphi 0, %s73
      %s76 = sphi 0, %s75
      %s90 = sphi 0, %s76
      %s94 = sphi 0, %s94
      %s96 = sphi 0, %s94
      %s97 = sphi 0, %s96
      %s111 = sphi 0, %s97
      %s115 = sphi 0, %s115
      %s117 = sphi 0, %s115
      %s118 = sphi 0, %s117
      %s132 = sphi 0, %s118
      %s136 = sphi 0, %s136
      %s138 = sphi 0, %s136
      %s139 = sphi 0, %s138
      %s153 = sphi 0, %s139
      %s157 = sphi 0, %s157
      %s159 = sphi 0, %s157
      %s160 = sphi 0, %s159
      %s174 = sphi 0, %s160
      %s178 = sphi 0, %s178
      %s180 = sphi 0, %s178
      %s181 = sphi 0, %s180
      %s195 = sphi 0, %s181
      %s199 = sphi 0, %s199
      %s201 = sphi 0, %s199
      %s202 = sphi 0, %s201
      %s216 = sphi 0, %s202
      %s222 = sphi 0, %s224
      %s225 = sphi 0, %s222
      %s226 = sphi 0, %s225
      %s242 = sphi 0, %s226
    $region4: #{pr_forward.1} parent=1 // loop_header_branch
      %21 = sbr.rel (%p19) target = $region8
    $region5: #{pr_forward.1} parent=1 // loop_body
      %s23 = ssub.s32 %s18, 1
      %s24 = ssub.s32 %s18, 2
      %s25 = sadd.s32 %s18, 1
      %s26 = ssub.s32 %s18, %s25
      %p27 = scmp.eq.s32.totalorder %s26, 0
      %s29 = sadd.s32 %s28, 1
      %s30 = scalar_select %p27, %s28, %s29
      %p33 = pneg %p27
      %p34 = scmp.eq.s32.totalorder %s18, 1
      %p35 = por %p33, %p34
      %p36 = scmp.ne.s32.totalorder %s28, %s31
      %p37 = scmp.eq.s32.totalorder %s18, 0
      %p38 = por %p36, %p37
      %p39 = scmp.ne.s32.totalorder %s28, %s31
      %p40 = scmp.eq.s32.totalorder %s23, 1
      %p41 = por %p39, %p40
      %p42 = scmp.ne.s32.totalorder %s31, %s32
      %p43 = scmp.eq.s32.totalorder %s23, 0
      %p44 = por %p42, %p43
      %p45 = scmp.ne.s32.totalorder %s31, %s32
      %p46 = scmp.eq.s32.totalorder %s24, 1
      %p47 = por %p45, %p46
      %p49 = scmp.ne.s32.totalorder %s32, %s48
      %p50 = scmp.eq.s32.totalorder %s24, 0
      %p51 = por %p49, %p50
      %s53 = sadd.s32 %s52, 1
      %p56 = scmp.eq.s32.totalorder %s18, 1
      %p57 = scmp.ne.s32.totalorder %s52, %s54
      %p58 = scmp.eq.s32.totalorder %s18, 0
      %p59 = por %p57, %p58
      %p60 = scmp.ne.s32.totalorder %s52, %s54
      %p61 = scmp.eq.s32.totalorder %s23, 1
      %p62 = por %p60, %p61
      %p63 = scmp.ne.s32.totalorder %s54, %s55
      %p64 = scmp.eq.s32.totalorder %s23, 0
      %p65 = por %p63, %p64
      %p66 = scmp.ne.s32.totalorder %s54, %s55
      %p67 = scmp.eq.s32.totalorder %s24, 1
      %p68 = por %p66, %p67
      %p70 = scmp.ne.s32.totalorder %s55, %s69
      %p71 = scmp.eq.s32.totalorder %s24, 0
      %p72 = por %p70, %p71
      %s74 = sadd.s32 %s73, 1
      %p77 = scmp.eq.s32.totalorder %s18, 1
      %p78 = scmp.ne.s32.totalorder %s73, %s75
      %p79 = scmp.eq.s32.totalorder %s18, 0
      %p80 = por %p78, %p79
      %p81 = scmp.ne.s32.totalorder %s73, %s75
      %p82 = scmp.eq.s32.totalorder %s23, 1
      %p83 = por %p81, %p82
      %p84 = scmp.ne.s32.totalorder %s75, %s76
      %p85 = scmp.eq.s32.totalorder %s23, 0
      %p86 = por %p84, %p85
      %p87 = scmp.ne.s32.totalorder %s75, %s76
      %p88 = scmp.eq.s32.totalorder %s24, 1
      %p89 = por %p87, %p88
      %p91 = scmp.ne.s32.totalorder %s76, %s90
      %p92 = scmp.eq.s32.totalorder %s24, 0
      %p93 = por %p91, %p92
      %s95 = sadd.s32 %s94, 1
      %p98 = scmp.eq.s32.totalorder %s18, 1
      %p99 = scmp.ne.s32.totalorder %s94, %s96
      %p100 = scmp.eq.s32.totalorder %s18, 0
      %p101 = por %p99, %p100
      %p102 = scmp.ne.s32.totalorder %s94, %s96
      %p103 = scmp.eq.s32.totalorder %s23, 1
      %p104 = por %p102, %p103
      %p105 = scmp.ne.s32.totalorder %s96, %s97
      %p106 = scmp.eq.s32.totalorder %s23, 0
      %p107 = por %p105, %p106
      %p108 = scmp.ne.s32.totalorder %s96, %s97
      %p109 = scmp.eq.s32.totalorder %s24, 1
      %p110 = por %p108, %p109
      %p112 = scmp.ne.s32.totalorder %s97, %s111
      %p113 = scmp.eq.s32.totalorder %s24, 0
      %p114 = por %p112, %p113
      %s116 = sadd.s32 %s115, 1
      %p119 = scmp.eq.s32.totalorder %s18, 1
      %p120 = scmp.ne.s32.totalorder %s115, %s117
      %p121 = scmp.eq.s32.totalorder %s18, 0
      %p122 = por %p120, %p121
      %p123 = scmp.ne.s32.totalorder %s115, %s117
      %p124 = scmp.eq.s32.totalorder %s23, 1
      %p125 = por %p123, %p124
      %p126 = scmp.ne.s32.totalorder %s117, %s118
      %p127 = scmp.eq.s32.totalorder %s23, 0
      %p128 = por %p126, %p127
      %p129 = scmp.ne.s32.totalorder %s117, %s118
      %p130 = scmp.eq.s32.totalorder %s24, 1
      %p131 = por %p129, %p130
      %p133 = scmp.ne.s32.totalorder %s118, %s132
      %p134 = scmp.eq.s32.totalorder %s24, 0
      %p135 = por %p133, %p134
      %s137 = sadd.s32 %s136, 1
      %p140 = scmp.eq.s32.totalorder %s18, 1
      %p141 = scmp.ne.s32.totalorder %s136, %s138
      %p142 = scmp.eq.s32.totalorder %s18, 0
      %p143 = por %p141, %p142
      %p144 = scmp.ne.s32.totalorder %s136, %s138
      %p145 = scmp.eq.s32.totalorder %s23, 1
      %p146 = por %p144, %p145
      %p147 = scmp.ne.s32.totalorder %s138, %s139
      %p148 = scmp.eq.s32.totalorder %s23, 0
      %p149 = por %p147, %p148
      %p150 = scmp.ne.s32.totalorder %s138, %s139
      %p151 = scmp.eq.s32.totalorder %s24, 1
      %p152 = por %p150, %p151
      %p154 = scmp.ne.s32.totalorder %s139, %s153
      %p155 = scmp.eq.s32.totalorder %s24, 0
      %p156 = por %p154, %p155
      %s158 = sadd.s32 %s157, 1
      %p161 = scmp.eq.s32.totalorder %s18, 1
      %p162 = scmp.ne.s32.totalorder %s157, %s159
      %p163 = scmp.eq.s32.totalorder %s18, 0
      %p164 = por %p162, %p163
      %p165 = scmp.ne.s32.totalorder %s157, %s159
      %p166 = scmp.eq.s32.totalorder %s23, 1
      %p167 = por %p165, %p166
      %p168 = scmp.ne.s32.totalorder %s159, %s160
      %p169 = scmp.eq.s32.totalorder %s23, 0
      %p170 = por %p168, %p169
      %p171 = scmp.ne.s32.totalorder %s159, %s160
      %p172 = scmp.eq.s32.totalorder %s24, 1
      %p173 = por %p171, %p172
      %p175 = scmp.ne.s32.totalorder %s160, %s174
      %p176 = scmp.eq.s32.totalorder %s24, 0
      %p177 = por %p175, %p176
      %s179 = sadd.s32 %s178, 1
      %p182 = scmp.eq.s32.totalorder %s18, 1
      %p183 = scmp.ne.s32.totalorder %s178, %s180
      %p184 = scmp.eq.s32.totalorder %s18, 0
      %p185 = por %p183, %p184
      %p186 = scmp.ne.s32.totalorder %s178, %s180
      %p187 = scmp.eq.s32.totalorder %s23, 1
      %p188 = por %p186, %p187
      %p189 = scmp.ne.s32.totalorder %s180, %s181
      %p190 = scmp.eq.s32.totalorder %s23, 0
      %p191 = por %p189, %p190
      %p192 = scmp.ne.s32.totalorder %s180, %s181
      %p193 = scmp.eq.s32.totalorder %s24, 1
      %p194 = por %p192, %p193
      %p196 = scmp.ne.s32.totalorder %s181, %s195
      %p197 = scmp.eq.s32.totalorder %s24, 0
      %p198 = por %p196, %p197
      %s200 = sadd.s32 %s199, 1
      %p203 = scmp.eq.s32.totalorder %s18, 1
      %p204 = scmp.ne.s32.totalorder %s199, %s201
      %p205 = scmp.eq.s32.totalorder %s18, 0
      %p206 = por %p204, %p205
      %p207 = scmp.ne.s32.totalorder %s199, %s201
      %p208 = scmp.eq.s32.totalorder %s23, 1
      %p209 = por %p207, %p208
      %p210 = scmp.ne.s32.totalorder %s201, %s202
      %p211 = scmp.eq.s32.totalorder %s23, 0
      %p212 = por %p210, %p211
      %p213 = scmp.ne.s32.totalorder %s201, %s202
      %p214 = scmp.eq.s32.totalorder %s24, 1
      %p215 = por %p213, %p214
      %p217 = scmp.ne.s32.totalorder %s202, %s216
      %p218 = scmp.eq.s32.totalorder %s24, 0
      %p219 = por %p217, %p218
      %s220 = ssub.s32 %s18, %s25
      %p221 = scmp.eq.s32.totalorder %s220, 0
      %s223 = sadd.s32 %s222, 1
      %s224 = scalar_select %p221, %s222, %s223
      %p227 = pneg %p221
      %p228 = scmp.eq.s32.totalorder %s18, 1
      %p229 = por %p227, %p228
      %p230 = scmp.ne.s32.totalorder %s222, %s225
      %p231 = scmp.eq.s32.totalorder %s18, 0
      %p232 = por %p230, %p231
      %p233 = scmp.ne.s32.totalorder %s222, %s225
      %p234 = scmp.eq.s32.totalorder %s23, 1
      %p235 = por %p233, %p234
      %p236 = scmp.ne.s32.totalorder %s225, %s226
      %p237 = scmp.eq.s32.totalorder %s23, 0
      %p238 = por %p236, %p237
      %p239 = scmp.ne.s32.totalorder %s225, %s226
      %p240 = scmp.eq.s32.totalorder %s24, 1
      %p241 = por %p239, %p240
      %p243 = scmp.ne.s32.totalorder %s226, %s242
      %p244 = scmp.eq.s32.totalorder %s24, 0
      %p245 = por %p243, %p244
      %p246 = scmp.le.s32.totalorder 1, %s18
      %p247 = scmp.lt.s32.totalorder %s18, 3
      %p248 = pnand %p246, %p247
      %p249 = pneg %p248
      // Predicated region
      $region9: #{pr_forward.1} parent=5 // pred_check
        _
      $region10: #{pr_forward.1} parent=5 // pred_check_branch
        %251 = sbr.rel (%p248) target = $region12
      $region11: #{pr_forward.1} parent=5 // pred_region
        %s252 = ssub.s32 %s18, 1
        // Predicated region
        $region13: #{pr_forward.1} parent=11 // pred_check
          %p253 = pneg %p65
        $region14: #{pr_forward.1} parent=11 // pred_check_branch
          %255 = sbr.rel (%p253) target = $region16
        $region15: #{pr_forward.1} parent=11 // pred_region
          _
        $region16: #{pr_forward.1} parent=11 // pred_fallthru
          _
        // Predicated region
        $region17: #{pr_forward.1} parent=11 // pred_check
          %p256 = pneg %p86
        $region18: #{pr_forward.1} parent=11 // pred_check_branch
          %258 = sbr.rel (%p256) target = $region20
        $region19: #{pr_forward.1} parent=11 // pred_region
          _
        $region20: #{pr_forward.1} parent=11 // pred_fallthru
          _
        // Predicated region
        $region21: #{pr_forward.1} parent=11 // pred_check
          %p259 = pneg %p107
        $region22: #{pr_forward.1} parent=11 // pred_check_branch
          %261 = sbr.rel (%p259) target = $region24
        $region23: #{pr_forward.1} parent=11 // pred_region
          _
        $region24: #{pr_forward.1} parent=11 // pred_fallthru
          _
        // Predicated region
        $region25: #{pr_forward.1} parent=11 // pred_check
          %p262 = pneg %p128
        $region26: #{pr_forward.1} parent=11 // pred_check_branch
          %264 = sbr.rel (%p262) target = $region28
        $region27: #{pr_forward.1} parent=11 // pred_region
          _
        $region28: #{pr_forward.1} parent=11 // pred_fallthru
          _
        // Predicated region
        $region29: #{pr_forward.1} parent=11 // pred_check
          %p265 = pneg %p149
        $region30: #{pr_forward.1} parent=11 // pred_check_branch
          %267 = sbr.rel (%p265) target = $region32
        $region31: #{pr_forward.1} parent=11 // pred_region
          _
        $region32: #{pr_forward.1} parent=11 // pred_fallthru
          _
        // Predicated region
        $region33: #{pr_forward.1} parent=11 // pred_check
          %p268 = pneg %p170
        $region34: #{pr_forward.1} parent=11 // pred_check_branch
          %270 = sbr.rel (%p268) target = $region36
        $region35: #{pr_forward.1} parent=11 // pred_region
          _
        $region36: #{pr_forward.1} parent=11 // pred_fallthru
          _
        // Predicated region
        $region37: #{pr_forward.1} parent=11 // pred_check
          %p271 = pneg %p191
        $region38: #{pr_forward.1} parent=11 // pred_check_branch
          %273 = sbr.rel (%p271) target = $region40
        $region39: #{pr_forward.1} parent=11 // pred_region
          _
        $region40: #{pr_forward.1} parent=11 // pred_fallthru
          _
        // Predicated region
        $region41: #{pr_forward.1} parent=11 // pred_check
          %p274 = pneg %p212
        $region42: #{pr_forward.1} parent=11 // pred_check_branch
          %276 = sbr.rel (%p274) target = $region44
        $region43: #{pr_forward.1} parent=11 // pred_region
          _
        $region44: #{pr_forward.1} parent=11 // pred_fallthru
          _
      $region12: #{pr_forward.1} parent=5 // pred_fallthru
        _
      %p277 = scmp.lt.s32.totalorder %s18, 2
      // Predicated region
      $region45: #{pr_forward.1} parent=5 // pred_check
        %p278 = pneg %p277
      $region46: #{pr_forward.1} parent=5 // pred_check_branch
        %280 = sbr.rel (%p278) target = $region48
      $region47: #{pr_forward.1} parent=5 // pred_region
        // Predicated region
        $region49: #{pr_forward.1} parent=47 // pred_check
          %p281 = pneg %p38
        $region50: #{pr_forward.1} parent=47 // pred_check_branch
          %283 = sbr.rel (%p281) target = $region52
        $region51: #{pr_forward.1} parent=47 // pred_region
          %p284 = scmp.lt.s32.totalorder %s18, 1
          %s285 = scalar_select %p284, %s18, 1
          %s286 = smul.addr %s285, 4
          %s287 = scalar_lea.vmem %s0, %s286
        $region52: #{pr_forward.1} parent=47 // pred_fallthru
          _
      $region48: #{pr_forward.1} parent=5 // pred_fallthru
        _
      %p288 = scmp.le.s32.totalorder 1, %s18
      %p289 = scmp.lt.s32.totalorder %s18, 3
      %p290 = pnand %p288, %p289
      %p291 = pneg %p290
      // Predicated region
      $region53: #{pr_forward.1} parent=5 // pred_check
        _
      $region54: #{pr_forward.1} parent=5 // pred_check_branch
        %293 = sbr.rel (%p290) target = $region56
      $region55: #{pr_forward.1} parent=5 // pred_region
        %s294 = ssub.s32 %s18, 1
        %p295 = scmp.lt.s32.totalorder %s23, 1
        %s296 = scalar_select %p295, %s23, 1
        %s297 = smul.addr %s296, 4
        %s298 = scalar_lea.vmem %s0, %s297
        %p299 = pneg %p44
        %p300 = pneg %p41
        %p301 = pneg %p65
        %p302 = pneg %p62
        %p303 = pneg %p86
        %p304 = pneg %p83
        %p305 = pneg %p107
        %p306 = pneg %p104
        %p307 = pneg %p128
        %p308 = pneg %p125
        %p309 = pneg %p149
        %p310 = pneg %p146
        %p311 = pneg %p170
        %p312 = pneg %p167
        %p313 = pneg %p191
        %p314 = pneg %p188
        %p315 = pneg %p212
        %p316 = pneg %p209
        %p317 = pneg %p238
        %p318 = pneg %p235
        %s319 = sand.u32 %s225, 1
        %s320 = scalar_lea.sflag [#allocation3], %s319
        %s321 = sand.u32 %s225, 1
        %s322 = smul.addr %s321, 4
        %s323 = scalar_lea.vmem [#allocation2], %s322
        %p324 = scmp.lt.s32.totalorder %s23, 1
        %s325 = scalar_select %p324, %s23, 1
        %s326 = smul.addr %s325, 4
        %s327 = scalar_lea.vmem %s0, %s326
        %v329 = vld [vmem:[%s1] sm:$0xf]
        %v330 = vld [vmem:[%s1 + $0x4] sm:$0xf]
        %v331 = vld [vmem:[%s1 + $0x8] sm:$0xf]
        %v332 = vld [vmem:[%s1 + $0xc] sm:$0xf]
        %v333 = vld [vmem:[%s1 + $0x10] sm:$0xf]
        %v334 = vld [vmem:[%s1 + $0x14] sm:$0xf]
        %v335 = vld [vmem:[%s1 + $0x18] sm:$0xf]
        %v336 = vld [vmem:[%s1 + $0x1c] sm:$0xf]
        %v337 = vld [vmem:[%s1 + $0x20] sm:$0xf]
        %v338 = vld [vmem:[%s1 + $0x24] sm:$0xf]
        %v339 = vld [vmem:[%s1 + $0x28] sm:$0xf]
        %v340 = vld [vmem:[%s1 + $0x2c] sm:$0xf]
        %v341 = vld [vmem:[%s1 + $0x30] sm:$0xf]
        %v342 = vld [vmem:[%s1 + $0x34] sm:$0xf]
        %v343 = vld [vmem:[%s1 + $0x38] sm:$0xf]
        %v344 = vld [vmem:[%s1 + $0x3c] sm:$0xf]
        %v345 = vld [vmem:[%s2] sm:$0xf]
        %v346 = vld [vmem:[%s2 + $0x4] sm:$0xf]
        %v347 = vld [vmem:[%s2 + $0x8] sm:$0xf]
        %v348 = vld [vmem:[%s2 + $0xc] sm:$0xf]
        %v349 = vld [vmem:[%s2 + $0x10] sm:$0xf]
        %v350 = vld [vmem:[%s2 + $0x14] sm:$0xf]
        %v351 = vld [vmem:[%s2 + $0x18] sm:$0xf]
        %v352 = vld [vmem:[%s2 + $0x1c] sm:$0xf]
        %v353 = vld [vmem:[%s2 + $0x20] sm:$0xf]
        %v354 = vld [vmem:[%s2 + $0x24] sm:$0xf]
        %v355 = vld [vmem:[%s2 + $0x28] sm:$0xf]
        %v356 = vld [vmem:[%s2 + $0x2c] sm:$0xf]
        %v357 = vld [vmem:[%s2 + $0x30] sm:$0xf]
        %v358 = vld [vmem:[%s2 + $0x34] sm:$0xf]
        %v359 = vld [vmem:[%s2 + $0x38] sm:$0xf]
        %v360 = vld [vmem:[%s2 + $0x3c] sm:$0xf]
        %v361 = vld [vmem:[%s327] sm:$0xf]
        %v362 = vpack.c.bf16 %v361, %v361
        %v379 = vunpack.c.l.b16 %v329
        %v380 = vunpack.c.l.b16 %v330
        %v381 = vunpack.c.l.b16 %v331
        %v382 = vunpack.c.l.b16 %v332
        %v383 = vunpack.c.l.b16 %v333
        %v384 = vunpack.c.l.b16 %v334
        %v385 = vunpack.c.l.b16 %v335
        %v386 = vunpack.c.l.b16 %v336
        %v387 = vunpack.c.l.b16 %v337
        %v388 = vunpack.c.l.b16 %v338
        %v389 = vunpack.c.l.b16 %v339
        %v390 = vunpack.c.l.b16 %v340
        %v391 = vunpack.c.l.b16 %v341
        %v392 = vunpack.c.l.b16 %v342
        %v393 = vunpack.c.l.b16 %v343
        %v394 = vunpack.c.l.b16 %v344
        %v395 = vpack.c.b16 %v380, %v379
        %v396 = vpack.c.b16 %v382, %v381
        %v397 = vpack.c.b16 %v384, %v383
        %v398 = vpack.c.b16 %v386, %v385
        %v399 = vpack.c.b16 %v388, %v387
        %v400 = vpack.c.b16 %v390, %v389
        %v401 = vpack.c.b16 %v392, %v391
        %v402 = vpack.c.b16 %v394, %v393
        %411 = vmatpush.bf16.msra.mxu0 %v402
        %412 = vmatpush.bf16.msra.mxu0 %v401
        %413 = vmatpush.bf16.msra.mxu0 %v400
        %414 = vmatpush.bf16.msra.mxu0 %v399
        %415 = vmatpush.bf16.msra.mxu0 %v398
        %416 = vmatpush.bf16.msra.mxu0 %v397
        %417 = vmatpush.bf16.msra.mxu0 %v396
        %418 = vmatpush.bf16.msra.mxu0 %v395
        %419 = vmatmul.bf16.gmra.mxu0 %v362
        %v420 = vpop.f32.mrf.mxu0
        %v421 = vadd.f32 0.0, %v420
        %v422 = vpop.f32.mrf.mxu0
        %423 = vdwg.mxu0
        %v440 = vunpack.c.l.b16 %v345
        %v441 = vunpack.c.l.b16 %v346
        %v442 = vunpack.c.l.b16 %v347
        %v443 = vunpack.c.l.b16 %v348
        %v444 = vunpack.c.l.b16 %v349
        %v445 = vunpack.c.l.b16 %v350
        %v446 = vunpack.c.l.b16 %v351
        %v447 = vunpack.c.l.b16 %v352
        %v448 = vunpack.c.l.b16 %v353
        %v449 = vunpack.c.l.b16 %v354
        %v450 = vunpack.c.l.b16 %v355
        %v451 = vunpack.c.l.b16 %v356
        %v452 = vunpack.c.l.b16 %v357
        %v453 = vunpack.c.l.b16 %v358
        %v454 = vunpack.c.l.b16 %v359
        %v455 = vunpack.c.l.b16 %v360
        %v456 = vpack.c.b16 %v441, %v440
        %v457 = vpack.c.b16 %v443, %v442
        %v458 = vpack.c.b16 %v445, %v444
        %v459 = vpack.c.b16 %v447, %v446
        %v460 = vpack.c.b16 %v449, %v448
        %v461 = vpack.c.b16 %v451, %v450
        %v462 = vpack.c.b16 %v453, %v452
        %v463 = vpack.c.b16 %v455, %v454
        %472 = vmatpush.bf16.msra.mxu0 %v463
        %473 = vmatpush.bf16.msra.mxu0 %v462
        %474 = vmatpush.bf16.msra.mxu0 %v461
        %475 = vmatpush.bf16.msra.mxu0 %v460
        %476 = vmatpush.bf16.msra.mxu0 %v459
        %477 = vmatpush.bf16.msra.mxu0 %v458
        %478 = vmatpush.bf16.msra.mxu0 %v457
        %479 = vmatpush.bf16.msra.mxu0 %v456
        %480 = vmatmul.bf16.gmra.mxu0 %v362
        %v481 = vpop.f32.mrf.mxu0
        %v482 = vadd.f32 0.0, %v481
        %v483 = vpop.f32.mrf.mxu0
        %484 = vdwg.mxu0
        %v485 = vld [vmem:[%s3] sm:$0xff]
        %v486 = vld [vmem:[%s3 + $0x8] sm:$0xff]
        %v487 = vld [vmem:[%s4] sm:$0xff]
        %v488 = vld [vmem:[%s4 + $0x8] sm:$0xff]
        %v489 = vmul.f32 %v421, %v485
        %v490 = vadd.f32 %v489, 0.0
        %v491 = vmul.f32 %v482, %v487
        %v492 = vsub.f32 %v490, %v491
        %v493 = vmul.f32 %v421, %v487
        %v494 = vadd.f32 %v493, 0.0
        %v495 = vmul.f32 %v482, %v485
        %v496 = vadd.f32 %v494, %v495
        %v498 = vrot.slane %v485, 3
        %v500 = vmul.f32 %v421, %v498
        %v502 = vrot.slane %v500, 1
        %v504 = vadd.f32 %v492, %v502
        %v506 = vrot.slane %v487, 3
        %v508 = vmul.f32 %v482, %v506
        %v510 = vrot.slane %v508, 1
        %v512 = vsub.f32 %v504, %v510
        %v513 = vmul.f32 %v421, %v506
        %v515 = vrot.slane %v513, 1
        %v517 = vadd.f32 %v496, %v515
        %v518 = vmul.f32 %v482, %v498
        %v520 = vrot.slane %v518, 1
        %v522 = vadd.f32 %v517, %v520
        %v524 = vrot.slane %v486, 6
        %v526 = vmul.f32 %v421, %v524
        %v528 = vrot.slane %v526, 2
        %v530 = vadd.f32 %v512, %v528
        %v532 = vrot.slane %v488, 6
        %v534 = vmul.f32 %v482, %v532
        %v536 = vrot.slane %v534, 2
        %v538 = vsub.f32 %v530, %v536
        %v539 = vmul.f32 %v421, %v532
        %v541 = vrot.slane %v539, 2
        %v543 = vadd.f32 %v522, %v541
        %v544 = vmul.f32 %v482, %v524
        %v546 = vrot.slane %v544, 2
        %v548 = vadd.f32 %v543, %v546
        %v549 = vrot.slane %v486, 1
        %v551 = vmul.f32 %v421, %v549
        %v553 = vrot.slane %v551, 3
        %v555 = vadd.f32 %v538, %v553
        %v556 = vrot.slane %v488, 1
        %v558 = vmul.f32 %v482, %v556
        %v560 = vrot.slane %v558, 3
        %v562 = vsub.f32 %v555, %v560
        %v563 = vmul.f32 %v421, %v556
        %v565 = vrot.slane %v563, 3
        %v567 = vadd.f32 %v548, %v565
        %v568 = vmul.f32 %v482, %v549
        %v570 = vrot.slane %v568, 3
        %v572 = vadd.f32 %v567, %v570
        %v573 = vrot.slane %v485, 1
        %v575 = vmul.f32 %v421, %v573
        %v576 = vadd.f32 %v575, 0.0
        %v577 = vrot.slane %v487, 1
        %v579 = vmul.f32 %v482, %v577
        %v580 = vsub.f32 %v576, %v579
        %v581 = vmul.f32 %v421, %v577
        %v582 = vadd.f32 %v581, 0.0
        %v583 = vmul.f32 %v482, %v573
        %v584 = vadd.f32 %v582, %v583
        %v585 = vrot.slane %v485, 4
        %v587 = vmul.f32 %v421, %v585
        %v589 = vrot.slane %v587, 1
        %v591 = vadd.f32 %v580, %v589
        %v592 = vrot.slane %v487, 4
        %v594 = vmul.f32 %v482, %v592
        %v596 = vrot.slane %v594, 1
        %v598 = vsub.f32 %v591, %v596
        %v599 = vmul.f32 %v421, %v592
        %v601 = vrot.slane %v599, 1
        %v603 = vadd.f32 %v584, %v601
        %v604 = vmul.f32 %v482, %v585
        %v606 = vrot.slane %v604, 1
        %v608 = vadd.f32 %v603, %v606
        %v609 = vrot.slane %v486, 7
        %v611 = vmul.f32 %v421, %v609
        %v613 = vrot.slane %v611, 2
        %v615 = vadd.f32 %v598, %v613
        %v616 = vrot.slane %v488, 7
        %v618 = vmul.f32 %v482, %v616
        %v620 = vrot.slane %v618, 2
        %v622 = vsub.f32 %v615, %v620
        %v623 = vmul.f32 %v421, %v616
        %v625 = vrot.slane %v623, 2
        %v627 = vadd.f32 %v608, %v625
        %v628 = vmul.f32 %v482, %v609
        %v630 = vrot.slane %v628, 2
        %v632 = vadd.f32 %v627, %v630
        %v633 = vrot.slane %v486, 2
        %v635 = vmul.f32 %v421, %v633
        %v637 = vrot.slane %v635, 3
        %v639 = vadd.f32 %v622, %v637
        %v640 = vrot.slane %v488, 2
        %v642 = vmul.f32 %v482, %v640
        %v644 = vrot.slane %v642, 3
        %v646 = vsub.f32 %v639, %v644
        %v647 = vmul.f32 %v421, %v640
        %v649 = vrot.slane %v647, 3
        %v651 = vadd.f32 %v632, %v649
        %v652 = vmul.f32 %v482, %v633
        %v654 = vrot.slane %v652, 3
        %v656 = vadd.f32 %v651, %v654
        %v657 = vrot.slane %v485, 2
        %v659 = vmul.f32 %v421, %v657
        %v660 = vadd.f32 %v659, 0.0
        %v661 = vrot.slane %v487, 2
        %v663 = vmul.f32 %v482, %v661
        %v664 = vsub.f32 %v660, %v663
        %v665 = vmul.f32 %v421, %v661
        %v666 = vadd.f32 %v665, 0.0
        %v667 = vmul.f32 %v482, %v657
        %v668 = vadd.f32 %v666, %v667
        %v669 = vrot.slane %v485, 5
        %v671 = vmul.f32 %v421, %v669
        %v673 = vrot.slane %v671, 1
        %v675 = vadd.f32 %v664, %v673
        %v676 = vrot.slane %v487, 5
        %v678 = vmul.f32 %v482, %v676
        %v680 = vrot.slane %v678, 1
        %v682 = vsub.f32 %v675, %v680
        %v683 = vmul.f32 %v421, %v676
        %v685 = vrot.slane %v683, 1
        %v687 = vadd.f32 %v668, %v685
        %v688 = vmul.f32 %v482, %v669
        %v690 = vrot.slane %v688, 1
        %v692 = vadd.f32 %v687, %v690
        %v693 = vmul.f32 %v421, %v486
        %v695 = vrot.slane %v693, 2
        %v697 = vadd.f32 %v682, %v695
        %v698 = vmul.f32 %v482, %v488
        %v700 = vrot.slane %v698, 2
        %v702 = vsub.f32 %v697, %v700
        %v703 = vmul.f32 %v421, %v488
        %v705 = vrot.slane %v703, 2
        %v707 = vadd.f32 %v692, %v705
        %v708 = vmul.f32 %v482, %v486
        %v710 = vrot.slane %v708, 2
        %v712 = vadd.f32 %v707, %v710
        %v713 = vrot.slane %v486, 3
        %v715 = vmul.f32 %v421, %v713
        %v717 = vrot.slane %v715, 3
        %v719 = vadd.f32 %v702, %v717
        %v720 = vrot.slane %v488, 3
        %v722 = vmul.f32 %v482, %v720
        %v724 = vrot.slane %v722, 3
        %v726 = vsub.f32 %v719, %v724
        %v727 = vmul.f32 %v421, %v720
        %v729 = vrot.slane %v727, 3
        %v731 = vadd.f32 %v712, %v729
        %v732 = vmul.f32 %v482, %v713
        %v734 = vrot.slane %v732, 3
        %v736 = vadd.f32 %v731, %v734
        %v737 = vadd.f32 %v500, 0.0
        %v738 = vsub.f32 %v737, %v508
        %v739 = vadd.f32 %v513, 0.0
        %v740 = vadd.f32 %v739, %v518
        %v741 = vrot.slane %v485, 6
        %v743 = vmul.f32 %v421, %v741
        %v745 = vrot.slane %v743, 1
        %v747 = vadd.f32 %v738, %v745
        %v748 = vrot.slane %v487, 6
        %v750 = vmul.f32 %v482, %v748
        %v752 = vrot.slane %v750, 1
        %v754 = vsub.f32 %v747, %v752
        %v755 = vmul.f32 %v421, %v748
        %v757 = vrot.slane %v755, 1
        %v759 = vadd.f32 %v740, %v757
        %v760 = vmul.f32 %v482, %v741
        %v762 = vrot.slane %v760, 1
        %v764 = vadd.f32 %v759, %v762
        %v765 = vrot.slane %v551, 2
        %v767 = vadd.f32 %v754, %v765
        %v768 = vrot.slane %v558, 2
        %v770 = vsub.f32 %v767, %v768
        %v771 = vrot.slane %v563, 2
        %v773 = vadd.f32 %v764, %v771
        %v774 = vrot.slane %v568, 2
        %v776 = vadd.f32 %v773, %v774
        %v777 = vrot.slane %v486, 4
        %v779 = vmul.f32 %v421, %v777
        %v781 = vrot.slane %v779, 3
        %v783 = vadd.f32 %v770, %v781
        %v784 = vrot.slane %v488, 4
        %v786 = vmul.f32 %v482, %v784
        %v788 = vrot.slane %v786, 3
        %v790 = vsub.f32 %v783, %v788
        %v791 = vmul.f32 %v421, %v784
        %v793 = vrot.slane %v791, 3
        %v795 = vadd.f32 %v776, %v793
        %v796 = vmul.f32 %v482, %v777
        %v798 = vrot.slane %v796, 3
        %v800 = vadd.f32 %v795, %v798
        %v802 = vrot.slane %v646, 7
        %v805 = vrot.slane %v726, 6
        %v808 = vrot.slane %v790, 5
        %vm810 = vcmask 1040384
        %v811 = vsel %vm810, %v562, %v802
        %vm812 = vcmask 1041408
        %v813 = vsel %vm812, %v811, %v805
        %vm814 = vcmask 1042432
        %v815 = vsel %vm814, %v813, %v808
        %v816 = vpack.c.bf16 %v815, %v815
        %v818 = vrot.slane %v656, 7
        %v821 = vrot.slane %v736, 6
        %v824 = vrot.slane %v800, 5
        %v826 = vsel %vm810, %v572, %v818
        %v827 = vsel %vm812, %v826, %v821
        %v828 = vsel %vm814, %v827, %v824
        %v829 = vpack.c.bf16 %v828, %v828
        %830 = vmatpush.bf16.msra.mxu0 %v463
        %831 = vmatpush.bf16.msra.mxu0 %v462
        %832 = vmatpush.bf16.msra.mxu0 %v461
        %833 = vmatpush.bf16.msra.mxu0 %v460
        %834 = vmatpush.bf16.msra.mxu0 %v459
        %835 = vmatpush.bf16.msra.mxu0 %v458
        %836 = vmatpush.bf16.msra.mxu0 %v457
        %837 = vmatpush.bf16.msra.mxu0 %v456
        %838 = vmatmul.bf16.gmra.mxu0 %v829
        %v839 = vpop.f32.mrf.mxu0
        %v840 = vadd.f32 0.0, %v839
        %v841 = vpop.f32.mrf.mxu0
        %842 = vdwg.mxu0
        %843 = vmatpush.bf16.msra.mxu0 %v402
        %844 = vmatpush.bf16.msra.mxu0 %v401
        %845 = vmatpush.bf16.msra.mxu0 %v400
        %846 = vmatpush.bf16.msra.mxu0 %v399
        %847 = vmatpush.bf16.msra.mxu0 %v398
        %848 = vmatpush.bf16.msra.mxu0 %v397
        %849 = vmatpush.bf16.msra.mxu0 %v396
        %850 = vmatpush.bf16.msra.mxu0 %v395
        %851 = vmatmul.bf16.gmra.mxu0 %v816
        %v852 = vpop.f32.mrf.mxu0
        %v853 = vadd.f32 %v840, %v852
        %v854 = vpop.f32.mrf.mxu0
        %855 = vdwg.mxu0
        %v857 = vrot.slane %v853, 1
        %v859 = vrot.slane %v853, 2
        %v861 = vrot.slane %v853, 3
        %v864 = vrot.slane %v421, 1
        %v866 = vrot.slane %v421, 2
        %v868 = vrot.slane %v421, 3
        %v870 = vpack.c.bf16 %v421, %v421
        %v871 = vpack.c.bf16 %v864, %v864
        %v872 = vpack.c.bf16 %v866, %v866
        %v873 = vpack.c.bf16 %v868, %v868
        %v875 = vrot.slane %v482, 1
        %v877 = vrot.slane %v482, 2
        %v879 = vrot.slane %v482, 3
        %v881 = vpack.c.bf16 %v482, %v482
        %v882 = vpack.c.bf16 %v875, %v875
        %v883 = vpack.c.bf16 %v877, %v877
        %v884 = vpack.c.bf16 %v879, %v879
        %v885 = vld [vmem:[%s5] sm:$0xf]
        %v886 = vld [vmem:[%s5 + $0x4] sm:$0xf]
        %v887 = vld [vmem:[%s5 + $0x8] sm:$0xf]
        %v888 = vld [vmem:[%s5 + $0xc] sm:$0xf]
        %v889 = vld [vmem:[%s5 + $0x10] sm:$0xf]
        %v890 = vld [vmem:[%s5 + $0x14] sm:$0xf]
        %v891 = vld [vmem:[%s5 + $0x18] sm:$0xf]
        %v892 = vld [vmem:[%s5 + $0x1c] sm:$0xf]
        %v893 = vld [vmem:[%s5 + $0x20] sm:$0xf]
        %v894 = vld [vmem:[%s5 + $0x24] sm:$0xf]
        %v895 = vld [vmem:[%s5 + $0x28] sm:$0xf]
        %v896 = vld [vmem:[%s5 + $0x2c] sm:$0xf]
        %v897 = vld [vmem:[%s5 + $0x30] sm:$0xf]
        %v898 = vld [vmem:[%s5 + $0x34] sm:$0xf]
        %v899 = vld [vmem:[%s5 + $0x38] sm:$0xf]
        %v900 = vld [vmem:[%s5 + $0x3c] sm:$0xf]
        %v901 = vld [vmem:[%s5 + $0x40] sm:$0xf]
        %v902 = vld [vmem:[%s5 + $0x44] sm:$0xf]
        %v903 = vld [vmem:[%s5 + $0x48] sm:$0xf]
        %v904 = vld [vmem:[%s5 + $0x4c] sm:$0xf]
        %v905 = vld [vmem:[%s5 + $0x50] sm:$0xf]
        %v906 = vld [vmem:[%s5 + $0x54] sm:$0xf]
        %v907 = vld [vmem:[%s5 + $0x58] sm:$0xf]
        %v908 = vld [vmem:[%s5 + $0x5c] sm:$0xf]
        %v909 = vld [vmem:[%s5 + $0x60] sm:$0xf]
        %v910 = vld [vmem:[%s5 + $0x64] sm:$0xf]
        %v911 = vld [vmem:[%s5 + $0x68] sm:$0xf]
        %v912 = vld [vmem:[%s5 + $0x6c] sm:$0xf]
        %v913 = vld [vmem:[%s5 + $0x70] sm:$0xf]
        %v914 = vld [vmem:[%s5 + $0x74] sm:$0xf]
        %v915 = vld [vmem:[%s5 + $0x78] sm:$0xf]
        %v916 = vld [vmem:[%s5 + $0x7c] sm:$0xf]
        %v917 = vld [vmem:[%s5 + $0x80] sm:$0xf]
        %v918 = vld [vmem:[%s5 + $0x84] sm:$0xf]
        %v919 = vld [vmem:[%s5 + $0x88] sm:$0xf]
        %v920 = vld [vmem:[%s5 + $0x8c] sm:$0xf]
        %v921 = vld [vmem:[%s5 + $0x90] sm:$0xf]
        %v922 = vld [vmem:[%s5 + $0x94] sm:$0xf]
        %v923 = vld [vmem:[%s5 + $0x98] sm:$0xf]
        %v924 = vld [vmem:[%s5 + $0x9c] sm:$0xf]
        %v925 = vld [vmem:[%s5 + $0xa0] sm:$0xf]
        %v926 = vld [vmem:[%s5 + $0xa4] sm:$0xf]
        %v927 = vld [vmem:[%s5 + $0xa8] sm:$0xf]
        %v928 = vld [vmem:[%s5 + $0xac] sm:$0xf]
        %v929 = vld [vmem:[%s5 + $0xb0] sm:$0xf]
        %v930 = vld [vmem:[%s5 + $0xb4] sm:$0xf]
        %v931 = vld [vmem:[%s5 + $0xb8] sm:$0xf]
        %v932 = vld [vmem:[%s5 + $0xbc] sm:$0xf]
        %v933 = vld [vmem:[%s5 + $0xc0] sm:$0xf]
        %v934 = vld [vmem:[%s5 + $0xc4] sm:$0xf]
        %v935 = vld [vmem:[%s5 + $0xc8] sm:$0xf]
        %v936 = vld [vmem:[%s5 + $0xcc] sm:$0xf]
        %v937 = vld [vmem:[%s5 + $0xd0] sm:$0xf]
        %v938 = vld [vmem:[%s5 + $0xd4] sm:$0xf]
        %v939 = vld [vmem:[%s5 + $0xd8] sm:$0xf]
        %v940 = vld [vmem:[%s5 + $0xdc] sm:$0xf]
        %v941 = vld [vmem:[%s5 + $0xe0] sm:$0xf]
        %v942 = vld [vmem:[%s5 + $0xe4] sm:$0xf]
        %v943 = vld [vmem:[%s5 + $0xe8] sm:$0xf]
        %v944 = vld [vmem:[%s5 + $0xec] sm:$0xf]
        %v945 = vld [vmem:[%s5 + $0xf0] sm:$0xf]
        %v946 = vld [vmem:[%s5 + $0xf4] sm:$0xf]
        %v947 = vld [vmem:[%s5 + $0xf8] sm:$0xf]
        %v948 = vld [vmem:[%s5 + $0xfc] sm:$0xf]
        %v949 = vld [vmem:[%s6] sm:$0xf]
        %v950 = vld [vmem:[%s6 + $0x4] sm:$0xf]
        %v951 = vld [vmem:[%s6 + $0x8] sm:$0xf]
        %v952 = vld [vmem:[%s6 + $0xc] sm:$0xf]
        %v953 = vld [vmem:[%s6 + $0x10] sm:$0xf]
        %v954 = vld [vmem:[%s6 + $0x14] sm:$0xf]
        %v955 = vld [vmem:[%s6 + $0x18] sm:$0xf]
        %v956 = vld [vmem:[%s6 + $0x1c] sm:$0xf]
        %v957 = vld [vmem:[%s6 + $0x20] sm:$0xf]
        %v958 = vld [vmem:[%s6 + $0x24] sm:$0xf]
        %v959 = vld [vmem:[%s6 + $0x28] sm:$0xf]
        %v960 = vld [vmem:[%s6 + $0x2c] sm:$0xf]
        %v961 = vld [vmem:[%s6 + $0x30] sm:$0xf]
        %v962 = vld [vmem:[%s6 + $0x34] sm:$0xf]
        %v963 = vld [vmem:[%s6 + $0x38] sm:$0xf]
        %v964 = vld [vmem:[%s6 + $0x3c] sm:$0xf]
        %v965 = vld [vmem:[%s6 + $0x40] sm:$0xf]
        %v966 = vld [vmem:[%s6 + $0x44] sm:$0xf]
        %v967 = vld [vmem:[%s6 + $0x48] sm:$0xf]
        %v968 = vld [vmem:[%s6 + $0x4c] sm:$0xf]
        %v969 = vld [vmem:[%s6 + $0x50] sm:$0xf]
        %v970 = vld [vmem:[%s6 + $0x54] sm:$0xf]
        %v971 = vld [vmem:[%s6 + $0x58] sm:$0xf]
        %v972 = vld [vmem:[%s6 + $0x5c] sm:$0xf]
        %v973 = vld [vmem:[%s6 + $0x60] sm:$0xf]
        %v974 = vld [vmem:[%s6 + $0x64] sm:$0xf]
        %v975 = vld [vmem:[%s6 + $0x68] sm:$0xf]
        %v976 = vld [vmem:[%s6 + $0x6c] sm:$0xf]
        %v977 = vld [vmem:[%s6 + $0x70] sm:$0xf]
        %v978 = vld [vmem:[%s6 + $0x74] sm:$0xf]
        %v979 = vld [vmem:[%s6 + $0x78] sm:$0xf]
        %v980 = vld [vmem:[%s6 + $0x7c] sm:$0xf]
        %v981 = vld [vmem:[%s6 + $0x80] sm:$0xf]
        %v982 = vld [vmem:[%s6 + $0x84] sm:$0xf]
        %v983 = vld [vmem:[%s6 + $0x88] sm:$0xf]
        %v984 = vld [vmem:[%s6 + $0x8c] sm:$0xf]
        %v985 = vld [vmem:[%s6 + $0x90] sm:$0xf]
        %v986 = vld [vmem:[%s6 + $0x94] sm:$0xf]
        %v987 = vld [vmem:[%s6 + $0x98] sm:$0xf]
        %v988 = vld [vmem:[%s6 + $0x9c] sm:$0xf]
        %v989 = vld [vmem:[%s6 + $0xa0] sm:$0xf]
        %v990 = vld [vmem:[%s6 + $0xa4] sm:$0xf]
        %v991 = vld [vmem:[%s6 + $0xa8] sm:$0xf]
        %v992 = vld [vmem:[%s6 + $0xac] sm:$0xf]
        %v993 = vld [vmem:[%s6 + $0xb0] sm:$0xf]
        %v994 = vld [vmem:[%s6 + $0xb4] sm:$0xf]
        %v995 = vld [vmem:[%s6 + $0xb8] sm:$0xf]
        %v996 = vld [vmem:[%s6 + $0xbc] sm:$0xf]
        %v997 = vld [vmem:[%s6 + $0xc0] sm:$0xf]
        %v998 = vld [vmem:[%s6 + $0xc4] sm:$0xf]
        %v999 = vld [vmem:[%s6 + $0xc8] sm:$0xf]
        %v1000 = vld [vmem:[%s6 + $0xcc] sm:$0xf]
        %v1001 = vld [vmem:[%s6 + $0xd0] sm:$0xf]
        %v1002 = vld [vmem:[%s6 + $0xd4] sm:$0xf]
        %v1003 = vld [vmem:[%s6 + $0xd8] sm:$0xf]
        %v1004 = vld [vmem:[%s6 + $0xdc] sm:$0xf]
        %v1005 = vld [vmem:[%s6 + $0xe0] sm:$0xf]
        %v1006 = vld [vmem:[%s6 + $0xe4] sm:$0xf]
        %v1007 = vld [vmem:[%s6 + $0xe8] sm:$0xf]
        %v1008 = vld [vmem:[%s6 + $0xec] sm:$0xf]
        %v1009 = vld [vmem:[%s6 + $0xf0] sm:$0xf]
        %v1010 = vld [vmem:[%s6 + $0xf4] sm:$0xf]
        %v1011 = vld [vmem:[%s6 + $0xf8] sm:$0xf]
        %v1012 = vld [vmem:[%s6 + $0xfc] sm:$0xf]
        %v1077 = vunpack.c.l.b16 %v885
        %v1078 = vunpack.c.l.b16 %v886
        %v1079 = vunpack.c.l.b16 %v887
        %v1080 = vunpack.c.l.b16 %v888
        %v1081 = vunpack.c.l.b16 %v889
        %v1082 = vunpack.c.l.b16 %v890
        %v1083 = vunpack.c.l.b16 %v891
        %v1084 = vunpack.c.l.b16 %v892
        %v1085 = vunpack.c.l.b16 %v893
        %v1086 = vunpack.c.l.b16 %v894
        %v1087 = vunpack.c.l.b16 %v895
        %v1088 = vunpack.c.l.b16 %v896
        %v1089 = vunpack.c.l.b16 %v897
        %v1090 = vunpack.c.l.b16 %v898
        %v1091 = vunpack.c.l.b16 %v899
        %v1092 = vunpack.c.l.b16 %v900
        %v1093 = vunpack.c.l.b16 %v901
        %v1094 = vunpack.c.l.b16 %v902
        %v1095 = vunpack.c.l.b16 %v903
        %v1096 = vunpack.c.l.b16 %v904
        %v1097 = vunpack.c.l.b16 %v905
        %v1098 = vunpack.c.l.b16 %v906
        %v1099 = vunpack.c.l.b16 %v907
        %v1100 = vunpack.c.l.b16 %v908
        %v1101 = vunpack.c.l.b16 %v909
        %v1102 = vunpack.c.l.b16 %v910
        %v1103 = vunpack.c.l.b16 %v911
        %v1104 = vunpack.c.l.b16 %v912
        %v1105 = vunpack.c.l.b16 %v913
        %v1106 = vunpack.c.l.b16 %v914
        %v1107 = vunpack.c.l.b16 %v915
        %v1108 = vunpack.c.l.b16 %v916
        %v1109 = vunpack.c.l.b16 %v917
        %v1110 = vunpack.c.l.b16 %v918
        %v1111 = vunpack.c.l.b16 %v919
        %v1112 = vunpack.c.l.b16 %v920
        %v1113 = vunpack.c.l.b16 %v921
        %v1114 = vunpack.c.l.b16 %v922
        %v1115 = vunpack.c.l.b16 %v923
        %v1116 = vunpack.c.l.b16 %v924
        %v1117 = vunpack.c.l.b16 %v925
        %v1118 = vunpack.c.l.b16 %v926
        %v1119 = vunpack.c.l.b16 %v927
        %v1120 = vunpack.c.l.b16 %v928
        %v1121 = vunpack.c.l.b16 %v929
        %v1122 = vunpack.c.l.b16 %v930
        %v1123 = vunpack.c.l.b16 %v931
        %v1124 = vunpack.c.l.b16 %v932
        %v1125 = vunpack.c.l.b16 %v933
        %v1126 = vunpack.c.l.b16 %v934
        %v1127 = vunpack.c.l.b16 %v935
        %v1128 = vunpack.c.l.b16 %v936
        %v1129 = vunpack.c.l.b16 %v937
        %v1130 = vunpack.c.l.b16 %v938
        %v1131 = vunpack.c.l.b16 %v939
        %v1132 = vunpack.c.l.b16 %v940
        %v1133 = vunpack.c.l.b16 %v941
        %v1134 = vunpack.c.l.b16 %v942
        %v1135 = vunpack.c.l.b16 %v943
        %v1136 = vunpack.c.l.b16 %v944
        %v1137 = vunpack.c.l.b16 %v945
        %v1138 = vunpack.c.l.b16 %v946
        %v1139 = vunpack.c.l.b16 %v947
        %v1140 = vunpack.c.l.b16 %v948
        %v1141 = vpack.c.b16 %v1078, %v1077
        %v1142 = vpack.c.b16 %v1080, %v1079
        %v1143 = vpack.c.b16 %v1082, %v1081
        %v1144 = vpack.c.b16 %v1084, %v1083
        %v1145 = vpack.c.b16 %v1086, %v1085
        %v1146 = vpack.c.b16 %v1088, %v1087
        %v1147 = vpack.c.b16 %v1090, %v1089
        %v1148 = vpack.c.b16 %v1092, %v1091
        %v1149 = vpack.c.b16 %v1094, %v1093
        %v1150 = vpack.c.b16 %v1096, %v1095
        %v1151 = vpack.c.b16 %v1098, %v1097
        %v1152 = vpack.c.b16 %v1100, %v1099
        %v1153 = vpack.c.b16 %v1102, %v1101
        %v1154 = vpack.c.b16 %v1104, %v1103
        %v1155 = vpack.c.b16 %v1106, %v1105
        %v1156 = vpack.c.b16 %v1108, %v1107
        %v1157 = vpack.c.b16 %v1110, %v1109
        %v1158 = vpack.c.b16 %v1112, %v1111
        %v1159 = vpack.c.b16 %v1114, %v1113
        %v1160 = vpack.c.b16 %v1116, %v1115
        %v1161 = vpack.c.b16 %v1118, %v1117
        %v1162 = vpack.c.b16 %v1120, %v1119
        %v1163 = vpack.c.b16 %v1122, %v1121
        %v1164 = vpack.c.b16 %v1124, %v1123
        %v1165 = vpack.c.b16 %v1126, %v1125
        %v1166 = vpack.c.b16 %v1128, %v1127
        %v1167 = vpack.c.b16 %v1130, %v1129
        %v1168 = vpack.c.b16 %v1132, %v1131
        %v1169 = vpack.c.b16 %v1134, %v1133
        %v1170 = vpack.c.b16 %v1136, %v1135
        %v1171 = vpack.c.b16 %v1138, %v1137
        %v1172 = vpack.c.b16 %v1140, %v1139
        %1205 = vmatpush.bf16.msra.mxu0 %v1148
        %1206 = vmatpush.bf16.msra.mxu0 %v1147
        %1207 = vmatpush.bf16.msra.mxu0 %v1146
        %1208 = vmatpush.bf16.msra.mxu0 %v1145
        %1209 = vmatpush.bf16.msra.mxu0 %v1144
        %1210 = vmatpush.bf16.msra.mxu0 %v1143
        %1211 = vmatpush.bf16.msra.mxu0 %v1142
        %1212 = vmatpush.bf16.msra.mxu0 %v1141
        %1213 = vmatmul.bf16.gmra.mxu0 %v870
        %v1214 = vpop.f32.mrf.mxu0
        %v1215 = vadd.f32 0.0, %v1214
        %v1216 = vpop.f32.mrf.mxu0
        %1217 = vdwg.mxu0
        %1218 = vmatpush.bf16.msra.mxu0 %v1156
        %1219 = vmatpush.bf16.msra.mxu0 %v1155
        %1220 = vmatpush.bf16.msra.mxu0 %v1154
        %1221 = vmatpush.bf16.msra.mxu0 %v1153
        %1222 = vmatpush.bf16.msra.mxu0 %v1152
        %1223 = vmatpush.bf16.msra.mxu0 %v1151
        %1224 = vmatpush.bf16.msra.mxu0 %v1150
        %1225 = vmatpush.bf16.msra.mxu0 %v1149
        %1226 = vmatmul.bf16.gmra.mxu0 %v871
        %v1227 = vpop.f32.mrf.mxu0
        %v1228 = vadd.f32 %v1215, %v1227
        %v1229 = vpop.f32.mrf.mxu0
        %1230 = vdwg.mxu0
        %1231 = vmatpush.bf16.msra.mxu0 %v1164
        %1232 = vmatpush.bf16.msra.mxu0 %v1163
        %1233 = vmatpush.bf16.msra.mxu0 %v1162
        %1234 = vmatpush.bf16.msra.mxu0 %v1161
        %1235 = vmatpush.bf16.msra.mxu0 %v1160
        %1236 = vmatpush.bf16.msra.mxu0 %v1159
        %1237 = vmatpush.bf16.msra.mxu0 %v1158
        %1238 = vmatpush.bf16.msra.mxu0 %v1157
        %1239 = vmatmul.bf16.gmra.mxu0 %v872
        %v1240 = vpop.f32.mrf.mxu0
        %v1241 = vadd.f32 %v1228, %v1240
        %v1242 = vpop.f32.mrf.mxu0
        %1243 = vdwg.mxu0
        %1244 = vmatpush.bf16.msra.mxu0 %v1172
        %1245 = vmatpush.bf16.msra.mxu0 %v1171
        %1246 = vmatpush.bf16.msra.mxu0 %v1170
        %1247 = vmatpush.bf16.msra.mxu0 %v1169
        %1248 = vmatpush.bf16.msra.mxu0 %v1168
        %1249 = vmatpush.bf16.msra.mxu0 %v1167
        %1250 = vmatpush.bf16.msra.mxu0 %v1166
        %1251 = vmatpush.bf16.msra.mxu0 %v1165
        %1252 = vmatmul.bf16.gmra.mxu0 %v873
        %v1253 = vpop.f32.mrf.mxu0
        %v1254 = vadd.f32 %v1241, %v1253
        %v1255 = vpop.f32.mrf.mxu0
        %1256 = vdwg.mxu0
        %v1321 = vunpack.c.l.b16 %v949
        %v1322 = vunpack.c.l.b16 %v950
        %v1323 = vunpack.c.l.b16 %v951
        %v1324 = vunpack.c.l.b16 %v952
        %v1325 = vunpack.c.l.b16 %v953
        %v1326 = vunpack.c.l.b16 %v954
        %v1327 = vunpack.c.l.b16 %v955
        %v1328 = vunpack.c.l.b16 %v956
        %v1329 = vunpack.c.l.b16 %v957
        %v1330 = vunpack.c.l.b16 %v958
        %v1331 = vunpack.c.l.b16 %v959
        %v1332 = vunpack.c.l.b16 %v960
        %v1333 = vunpack.c.l.b16 %v961
        %v1334 = vunpack.c.l.b16 %v962
        %v1335 = vunpack.c.l.b16 %v963
        %v1336 = vunpack.c.l.b16 %v964
        %v1337 = vunpack.c.l.b16 %v965
        %v1338 = vunpack.c.l.b16 %v966
        %v1339 = vunpack.c.l.b16 %v967
        %v1340 = vunpack.c.l.b16 %v968
        %v1341 = vunpack.c.l.b16 %v969
        %v1342 = vunpack.c.l.b16 %v970
        %v1343 = vunpack.c.l.b16 %v971
        %v1344 = vunpack.c.l.b16 %v972
        %v1345 = vunpack.c.l.b16 %v973
        %v1346 = vunpack.c.l.b16 %v974
        %v1347 = vunpack.c.l.b16 %v975
        %v1348 = vunpack.c.l.b16 %v976
        %v1349 = vunpack.c.l.b16 %v977
        %v1350 = vunpack.c.l.b16 %v978
        %v1351 = vunpack.c.l.b16 %v979
        %v1352 = vunpack.c.l.b16 %v980
        %v1353 = vunpack.c.l.b16 %v981
        %v1354 = vunpack.c.l.b16 %v982
        %v1355 = vunpack.c.l.b16 %v983
        %v1356 = vunpack.c.l.b16 %v984
        %v1357 = vunpack.c.l.b16 %v985
        %v1358 = vunpack.c.l.b16 %v986
        %v1359 = vunpack.c.l.b16 %v987
        %v1360 = vunpack.c.l.b16 %v988
        %v1361 = vunpack.c.l.b16 %v989
        %v1362 = vunpack.c.l.b16 %v990
        %v1363 = vunpack.c.l.b16 %v991
        %v1364 = vunpack.c.l.b16 %v992
        %v1365 = vunpack.c.l.b16 %v993
        %v1366 = vunpack.c.l.b16 %v994
        %v1367 = vunpack.c.l.b16 %v995
        %v1368 = vunpack.c.l.b16 %v996
        %v1369 = vunpack.c.l.b16 %v997
        %v1370 = vunpack.c.l.b16 %v998
        %v1371 = vunpack.c.l.b16 %v999
        %v1372 = vunpack.c.l.b16 %v1000
        %v1373 = vunpack.c.l.b16 %v1001
        %v1374 = vunpack.c.l.b16 %v1002
        %v1375 = vunpack.c.l.b16 %v1003
        %v1376 = vunpack.c.l.b16 %v1004
        %v1377 = vunpack.c.l.b16 %v1005
        %v1378 = vunpack.c.l.b16 %v1006
        %v1379 = vunpack.c.l.b16 %v1007
        %v1380 = vunpack.c.l.b16 %v1008
        %v1381 = vunpack.c.l.b16 %v1009
        %v1382 = vunpack.c.l.b16 %v1010
        %v1383 = vunpack.c.l.b16 %v1011
        %v1384 = vunpack.c.l.b16 %v1012
        %v1385 = vpack.c.b16 %v1322, %v1321
        %v1386 = vpack.c.b16 %v1324, %v1323
        %v1387 = vpack.c.b16 %v1326, %v1325
        %v1388 = vpack.c.b16 %v1328, %v1327
        %v1389 = vpack.c.b16 %v1330, %v1329
        %v1390 = vpack.c.b16 %v1332, %v1331
        %v1391 = vpack.c.b16 %v1334, %v1333
        %v1392 = vpack.c.b16 %v1336, %v1335
        %v1393 = vpack.c.b16 %v1338, %v1337
        %v1394 = vpack.c.b16 %v1340, %v1339
        %v1395 = vpack.c.b16 %v1342, %v1341
        %v1396 = vpack.c.b16 %v1344, %v1343
        %v1397 = vpack.c.b16 %v1346, %v1345
        %v1398 = vpack.c.b16 %v1348, %v1347
        %v1399 = vpack.c.b16 %v1350, %v1349
        %v1400 = vpack.c.b16 %v1352, %v1351
        %v1401 = vpack.c.b16 %v1354, %v1353
        %v1402 = vpack.c.b16 %v1356, %v1355
        %v1403 = vpack.c.b16 %v1358, %v1357
        %v1404 = vpack.c.b16 %v1360, %v1359
        %v1405 = vpack.c.b16 %v1362, %v1361
        %v1406 = vpack.c.b16 %v1364, %v1363
        %v1407 = vpack.c.b16 %v1366, %v1365
        %v1408 = vpack.c.b16 %v1368, %v1367
        %v1409 = vpack.c.b16 %v1370, %v1369
        %v1410 = vpack.c.b16 %v1372, %v1371
        %v1411 = vpack.c.b16 %v1374, %v1373
        %v1412 = vpack.c.b16 %v1376, %v1375
        %v1413 = vpack.c.b16 %v1378, %v1377
        %v1414 = vpack.c.b16 %v1380, %v1379
        %v1415 = vpack.c.b16 %v1382, %v1381
        %v1416 = vpack.c.b16 %v1384, %v1383
        %1449 = vmatpush.bf16.msra.mxu0 %v1392
        %1450 = vmatpush.bf16.msra.mxu0 %v1391
        %1451 = vmatpush.bf16.msra.mxu0 %v1390
        %1452 = vmatpush.bf16.msra.mxu0 %v1389
        %1453 = vmatpush.bf16.msra.mxu0 %v1388
        %1454 = vmatpush.bf16.msra.mxu0 %v1387
        %1455 = vmatpush.bf16.msra.mxu0 %v1386
        %1456 = vmatpush.bf16.msra.mxu0 %v1385
        %1457 = vmatmul.bf16.gmra.mxu0 %v881
        %v1458 = vpop.f32.mrf.mxu0
        %v1459 = vadd.f32 0.0, %v1458
        %v1460 = vpop.f32.mrf.mxu0
        %1461 = vdwg.mxu0
        %1462 = vmatpush.bf16.msra.mxu0 %v1400
        %1463 = vmatpush.bf16.msra.mxu0 %v1399
        %1464 = vmatpush.bf16.msra.mxu0 %v1398
        %1465 = vmatpush.bf16.msra.mxu0 %v1397
        %1466 = vmatpush.bf16.msra.mxu0 %v1396
        %1467 = vmatpush.bf16.msra.mxu0 %v1395
        %1468 = vmatpush.bf16.msra.mxu0 %v1394
        %1469 = vmatpush.bf16.msra.mxu0 %v1393
        %1470 = vmatmul.bf16.gmra.mxu0 %v882
        %v1471 = vpop.f32.mrf.mxu0
        %v1472 = vadd.f32 %v1459, %v1471
        %v1473 = vpop.f32.mrf.mxu0
        %1474 = vdwg.mxu0
        %1475 = vmatpush.bf16.msra.mxu0 %v1408
        %1476 = vmatpush.bf16.msra.mxu0 %v1407
        %1477 = vmatpush.bf16.msra.mxu0 %v1406
        %1478 = vmatpush.bf16.msra.mxu0 %v1405
        %1479 = vmatpush.bf16.msra.mxu0 %v1404
        %1480 = vmatpush.bf16.msra.mxu0 %v1403
        %1481 = vmatpush.bf16.msra.mxu0 %v1402
        %1482 = vmatpush.bf16.msra.mxu0 %v1401
        %1483 = vmatmul.bf16.gmra.mxu0 %v883
        %v1484 = vpop.f32.mrf.mxu0
        %v1485 = vadd.f32 %v1472, %v1484
        %v1486 = vpop.f32.mrf.mxu0
        %1487 = vdwg.mxu0
        %1488 = vmatpush.bf16.msra.mxu0 %v1416
        %1489 = vmatpush.bf16.msra.mxu0 %v1415
        %1490 = vmatpush.bf16.msra.mxu0 %v1414
        %1491 = vmatpush.bf16.msra.mxu0 %v1413
        %1492 = vmatpush.bf16.msra.mxu0 %v1412
        %1493 = vmatpush.bf16.msra.mxu0 %v1411
        %1494 = vmatpush.bf16.msra.mxu0 %v1410
        %1495 = vmatpush.bf16.msra.mxu0 %v1409
        %1496 = vmatmul.bf16.gmra.mxu0 %v884
        %v1497 = vpop.f32.mrf.mxu0
        %v1498 = vadd.f32 %v1485, %v1497
        %v1499 = vpop.f32.mrf.mxu0
        %1500 = vdwg.mxu0
        %v1501 = vsub.f32 %v1254, %v1498
        %1502 = vmatpush.bf16.msra.mxu0 %v1148
        %1503 = vmatpush.bf16.msra.mxu0 %v1147
        %1504 = vmatpush.bf16.msra.mxu0 %v1146
        %1505 = vmatpush.bf16.msra.mxu0 %v1145
        %1506 = vmatpush.bf16.msra.mxu0 %v1144
        %1507 = vmatpush.bf16.msra.mxu0 %v1143
        %1508 = vmatpush.bf16.msra.mxu0 %v1142
        %1509 = vmatpush.bf16.msra.mxu0 %v1141
        %1510 = vmatmul.bf16.gmra.mxu0 %v881
        %v1511 = vpop.f32.mrf.mxu0
        %v1512 = vadd.f32 0.0, %v1511
        %v1513 = vpop.f32.mrf.mxu0
        %1514 = vdwg.mxu0
        %1515 = vmatpush.bf16.msra.mxu0 %v1156
        %1516 = vmatpush.bf16.msra.mxu0 %v1155
        %1517 = vmatpush.bf16.msra.mxu0 %v1154
        %1518 = vmatpush.bf16.msra.mxu0 %v1153
        %1519 = vmatpush.bf16.msra.mxu0 %v1152
        %1520 = vmatpush.bf16.msra.mxu0 %v1151
        %1521 = vmatpush.bf16.msra.mxu0 %v1150
        %1522 = vmatpush.bf16.msra.mxu0 %v1149
        %1523 = vmatmul.bf16.gmra.mxu0 %v882
        %v1524 = vpop.f32.mrf.mxu0
        %v1525 = vadd.f32 %v1512, %v1524
        %v1526 = vpop.f32.mrf.mxu0
        %1527 = vdwg.mxu0
        %1528 = vmatpush.bf16.msra.mxu0 %v1164
        %1529 = vmatpush.bf16.msra.mxu0 %v1163
        %1530 = vmatpush.bf16.msra.mxu0 %v1162
        %1531 = vmatpush.bf16.msra.mxu0 %v1161
        %1532 = vmatpush.bf16.msra.mxu0 %v1160
        %1533 = vmatpush.bf16.msra.mxu0 %v1159
        %1534 = vmatpush.bf16.msra.mxu0 %v1158
        %1535 = vmatpush.bf16.msra.mxu0 %v1157
        %1536 = vmatmul.bf16.gmra.mxu0 %v883
        %v1537 = vpop.f32.mrf.mxu0
        %v1538 = vadd.f32 %v1525, %v1537
        %v1539 = vpop.f32.mrf.mxu0
        %1540 = vdwg.mxu0
        %1541 = vmatpush.bf16.msra.mxu0 %v1172
        %1542 = vmatpush.bf16.msra.mxu0 %v1171
        %1543 = vmatpush.bf16.msra.mxu0 %v1170
        %1544 = vmatpush.bf16.msra.mxu0 %v1169
        %1545 = vmatpush.bf16.msra.mxu0 %v1168
        %1546 = vmatpush.bf16.msra.mxu0 %v1167
        %1547 = vmatpush.bf16.msra.mxu0 %v1166
        %1548 = vmatpush.bf16.msra.mxu0 %v1165
        %1549 = vmatmul.bf16.gmra.mxu0 %v884
        %v1550 = vpop.f32.mrf.mxu0
        %v1551 = vadd.f32 %v1538, %v1550
        %v1552 = vpop.f32.mrf.mxu0
        %1553 = vdwg.mxu0
        %1554 = vmatpush.bf16.msra.mxu0 %v1392
        %1555 = vmatpush.bf16.msra.mxu0 %v1391
        %1556 = vmatpush.bf16.msra.mxu0 %v1390
        %1557 = vmatpush.bf16.msra.mxu0 %v1389
        %1558 = vmatpush.bf16.msra.mxu0 %v1388
        %1559 = vmatpush.bf16.msra.mxu0 %v1387
        %1560 = vmatpush.bf16.msra.mxu0 %v1386
        %1561 = vmatpush.bf16.msra.mxu0 %v1385
        %1562 = vmatmul.bf16.gmra.mxu0 %v870
        %v1563 = vpop.f32.mrf.mxu0
        %v1564 = vadd.f32 %v1551, %v1563
        %v1565 = vpop.f32.mrf.mxu0
        %1566 = vdwg.mxu0
        %1567 = vmatpush.bf16.msra.mxu0 %v1400
        %1568 = vmatpush.bf16.msra.mxu0 %v1399
        %1569 = vmatpush.bf16.msra.mxu0 %v1398
        %1570 = vmatpush.bf16.msra.mxu0 %v1397
        %1571 = vmatpush.bf16.msra.mxu0 %v1396
        %1572 = vmatpush.bf16.msra.mxu0 %v1395
        %1573 = vmatpush.bf16.msra.mxu0 %v1394
        %1574 = vmatpush.bf16.msra.mxu0 %v1393
        %1575 = vmatmul.bf16.gmra.mxu0 %v871
        %v1576 = vpop.f32.mrf.mxu0
        %v1577 = vadd.f32 %v1564, %v1576
        %v1578 = vpop.f32.mrf.mxu0
        %1579 = vdwg.mxu0
        %1580 = vmatpush.bf16.msra.mxu0 %v1408
        %1581 = vmatpush.bf16.msra.mxu0 %v1407
        %1582 = vmatpush.bf16.msra.mxu0 %v1406
        %1583 = vmatpush.bf16.msra.mxu0 %v1405
        %1584 = vmatpush.bf16.msra.mxu0 %v1404
        %1585 = vmatpush.bf16.msra.mxu0 %v1403
        %1586 = vmatpush.bf16.msra.mxu0 %v1402
        %1587 = vmatpush.bf16.msra.mxu0 %v1401
        %1588 = vmatmul.bf16.gmra.mxu0 %v872
        %v1589 = vpop.f32.mrf.mxu0
        %v1590 = vadd.f32 %v1577, %v1589
        %v1591 = vpop.f32.mrf.mxu0
        %1592 = vdwg.mxu0
        %1593 = vmatpush.bf16.msra.mxu0 %v1416
        %1594 = vmatpush.bf16.msra.mxu0 %v1415
        %1595 = vmatpush.bf16.msra.mxu0 %v1414
        %1596 = vmatpush.bf16.msra.mxu0 %v1413
        %1597 = vmatpush.bf16.msra.mxu0 %v1412
        %1598 = vmatpush.bf16.msra.mxu0 %v1411
        %1599 = vmatpush.bf16.msra.mxu0 %v1410
        %1600 = vmatpush.bf16.msra.mxu0 %v1409
        %1601 = vmatmul.bf16.gmra.mxu0 %v873
        %v1602 = vpop.f32.mrf.mxu0
        %v1603 = vadd.f32 %v1590, %v1602
        %v1604 = vpop.f32.mrf.mxu0
        %1605 = vdwg.mxu0
        %v1606 = vpack.c.bf16 %v1501, %v1501
        %v1607 = vld [vmem:[%s7] sm:$0xff]
        %v1608 = vld [vmem:[%s7 + $0x8] sm:$0xff]
        %v1609 = vld [vmem:[%s7 + $0x10] sm:$0xff]
        %v1610 = vld [vmem:[%s7 + $0x18] sm:$0xff]
        %v1611 = vld [vmem:[%s7 + $0x20] sm:$0xff]
        %v1612 = vld [vmem:[%s7 + $0x28] sm:$0xff]
        %v1613 = vld [vmem:[%s7 + $0x30] sm:$0xff]
        %v1614 = vld [vmem:[%s7 + $0x38] sm:$0xff]
        %v1623 = vunpack.c.l.b16 %v1607
        %v1624 = vunpack.c.h.b16 %v1607
        %v1625 = vunpack.c.l.b16 %v1608
        %v1626 = vunpack.c.h.b16 %v1608
        %v1627 = vunpack.c.l.b16 %v1609
        %v1628 = vunpack.c.h.b16 %v1609
        %v1629 = vunpack.c.l.b16 %v1610
        %v1630 = vunpack.c.h.b16 %v1610
        %v1631 = vunpack.c.l.b16 %v1611
        %v1632 = vunpack.c.h.b16 %v1611
        %v1633 = vunpack.c.l.b16 %v1612
        %v1634 = vunpack.c.h.b16 %v1612
        %v1635 = vunpack.c.l.b16 %v1613
        %v1636 = vunpack.c.h.b16 %v1613
        %v1637 = vunpack.c.l.b16 %v1614
        %v1638 = vunpack.c.h.b16 %v1614
        %v1639 = vpack.c.b16 %v1627, %v1623
        %v1640 = vpack.c.b16 %v1628, %v1624
        %v1641 = vpack.c.b16 %v1629, %v1625
        %v1642 = vpack.c.b16 %v1630, %v1626
        %v1643 = vpack.c.b16 %v1635, %v1631
        %v1644 = vpack.c.b16 %v1636, %v1632
        %v1645 = vpack.c.b16 %v1637, %v1633
        %v1646 = vpack.c.b16 %v1638, %v1634
        %vm1655 = vcmask 261120
        %v1657 = vsel %vm1655, %v1606, 0
        %1659 = vmatpush.bf16.msra.mxu0 0
        %1660 = vmatpush.bf16.msra.mxu0 0
        %1661 = vmatpush.bf16.msra.mxu0 0
        %1662 = vmatpush.bf16.msra.mxu0 0
        %1663 = vmatpush.bf16.msra.mxu0 0
        %1664 = vmatpush.bf16.msra.mxu0 0
        %1665 = vmatpush.bf16.msra.mxu0 %v1643
        %1666 = vmatpush.bf16.msra.mxu0 %v1639
        %1667 = vmatmul.bf16.gmra.mxu0 %v1657
        %v1668 = vpop.f32.mrf.mxu0
        %v1669 = vadd.f32 0.0, %v1668
        %v1670 = vpop.f32.mrf.mxu0
        %1671 = vdwg.mxu0
        %1672 = vmatpush.bf16.msra.mxu0 0
        %1673 = vmatpush.bf16.msra.mxu0 0
        %1674 = vmatpush.bf16.msra.mxu0 0
        %1675 = vmatpush.bf16.msra.mxu0 0
        %1676 = vmatpush.bf16.msra.mxu0 0
        %1677 = vmatpush.bf16.msra.mxu0 0
        %1678 = vmatpush.bf16.msra.mxu0 %v1644
        %1679 = vmatpush.bf16.msra.mxu0 %v1640
        %1680 = vmatmul.bf16.gmra.mxu0 %v1657
        %v1681 = vpop.f32.mrf.mxu0
        %v1682 = vadd.f32 0.0, %v1681
        %v1683 = vpop.f32.mrf.mxu0
        %1684 = vdwg.mxu0
        %1685 = vmatpush.bf16.msra.mxu0 0
        %1686 = vmatpush.bf16.msra.mxu0 0
        %1687 = vmatpush.bf16.msra.mxu0 0
        %1688 = vmatpush.bf16.msra.mxu0 0
        %1689 = vmatpush.bf16.msra.mxu0 0
        %1690 = vmatpush.bf16.msra.mxu0 0
        %1691 = vmatpush.bf16.msra.mxu0 %v1645
        %1692 = vmatpush.bf16.msra.mxu0 %v1641
        %1693 = vmatmul.bf16.gmra.mxu0 %v1657
        %v1694 = vpop.f32.mrf.mxu0
        %v1695 = vadd.f32 0.0, %v1694
        %v1696 = vpop.f32.mrf.mxu0
        %1697 = vdwg.mxu0
        %1698 = vmatpush.bf16.msra.mxu0 0
        %1699 = vmatpush.bf16.msra.mxu0 0
        %1700 = vmatpush.bf16.msra.mxu0 0
        %1701 = vmatpush.bf16.msra.mxu0 0
        %1702 = vmatpush.bf16.msra.mxu0 0
        %1703 = vmatpush.bf16.msra.mxu0 0
        %1704 = vmatpush.bf16.msra.mxu0 %v1646
        %1705 = vmatpush.bf16.msra.mxu0 %v1642
        %1706 = vmatmul.bf16.gmra.mxu0 %v1657
        %v1707 = vpop.f32.mrf.mxu0
        %v1708 = vadd.f32 0.0, %v1707
        %v1709 = vpop.f32.mrf.mxu0
        %1710 = vdwg.mxu0
        %v1711 = vpack.c.bf16 %v1603, %v1603
        %v1712 = vld [vmem:[%s8] sm:$0xff]
        %v1713 = vld [vmem:[%s8 + $0x8] sm:$0xff]
        %v1714 = vld [vmem:[%s8 + $0x10] sm:$0xff]
        %v1715 = vld [vmem:[%s8 + $0x18] sm:$0xff]
        %v1716 = vld [vmem:[%s8 + $0x20] sm:$0xff]
        %v1717 = vld [vmem:[%s8 + $0x28] sm:$0xff]
        %v1718 = vld [vmem:[%s8 + $0x30] sm:$0xff]
        %v1719 = vld [vmem:[%s8 + $0x38] sm:$0xff]
        %v1728 = vunpack.c.l.b16 %v1712
        %v1729 = vunpack.c.h.b16 %v1712
        %v1730 = vunpack.c.l.b16 %v1713
        %v1731 = vunpack.c.h.b16 %v1713
        %v1732 = vunpack.c.l.b16 %v1714
        %v1733 = vunpack.c.h.b16 %v1714
        %v1734 = vunpack.c.l.b16 %v1715
        %v1735 = vunpack.c.h.b16 %v1715
        %v1736 = vunpack.c.l.b16 %v1716
        %v1737 = vunpack.c.h.b16 %v1716
        %v1738 = vunpack.c.l.b16 %v1717
        %v1739 = vunpack.c.h.b16 %v1717
        %v1740 = vunpack.c.l.b16 %v1718
        %v1741 = vunpack.c.h.b16 %v1718
        %v1742 = vunpack.c.l.b16 %v1719
        %v1743 = vunpack.c.h.b16 %v1719
        %v1744 = vpack.c.b16 %v1732, %v1728
        %v1745 = vpack.c.b16 %v1733, %v1729
        %v1746 = vpack.c.b16 %v1734, %v1730
        %v1747 = vpack.c.b16 %v1735, %v1731
        %v1748 = vpack.c.b16 %v1740, %v1736
        %v1749 = vpack.c.b16 %v1741, %v1737
        %v1750 = vpack.c.b16 %v1742, %v1738
        %v1751 = vpack.c.b16 %v1743, %v1739
        %v1761 = vsel %vm1655, %v1711, 0
        %1763 = vmatpush.bf16.msra.mxu0 0
        %1764 = vmatpush.bf16.msra.mxu0 0
        %1765 = vmatpush.bf16.msra.mxu0 0
        %1766 = vmatpush.bf16.msra.mxu0 0
        %1767 = vmatpush.bf16.msra.mxu0 0
        %1768 = vmatpush.bf16.msra.mxu0 0
        %1769 = vmatpush.bf16.msra.mxu0 %v1748
        %1770 = vmatpush.bf16.msra.mxu0 %v1744
        %1771 = vmatmul.bf16.gmra.mxu0 %v1761
        %v1772 = vpop.f32.mrf.mxu0
        %v1773 = vadd.f32 0.0, %v1772
        %v1774 = vpop.f32.mrf.mxu0
        %1775 = vdwg.mxu0
        %1776 = vmatpush.bf16.msra.mxu0 0
        %1777 = vmatpush.bf16.msra.mxu0 0
        %1778 = vmatpush.bf16.msra.mxu0 0
        %1779 = vmatpush.bf16.msra.mxu0 0
        %1780 = vmatpush.bf16.msra.mxu0 0
        %1781 = vmatpush.bf16.msra.mxu0 0
        %1782 = vmatpush.bf16.msra.mxu0 %v1749
        %1783 = vmatpush.bf16.msra.mxu0 %v1745
        %1784 = vmatmul.bf16.gmra.mxu0 %v1761
        %v1785 = vpop.f32.mrf.mxu0
        %v1786 = vadd.f32 0.0, %v1785
        %v1787 = vpop.f32.mrf.mxu0
        %1788 = vdwg.mxu0
        %1789 = vmatpush.bf16.msra.mxu0 0
        %1790 = vmatpush.bf16.msra.mxu0 0
        %1791 = vmatpush.bf16.msra.mxu0 0
        %1792 = vmatpush.bf16.msra.mxu0 0
        %1793 = vmatpush.bf16.msra.mxu0 0
        %1794 = vmatpush.bf16.msra.mxu0 0
        %1795 = vmatpush.bf16.msra.mxu0 %v1750
        %1796 = vmatpush.bf16.msra.mxu0 %v1746
        %1797 = vmatmul.bf16.gmra.mxu0 %v1761
        %v1798 = vpop.f32.mrf.mxu0
        %v1799 = vadd.f32 0.0, %v1798
        %v1800 = vpop.f32.mrf.mxu0
        %1801 = vdwg.mxu0
        %1802 = vmatpush.bf16.msra.mxu0 0
        %1803 = vmatpush.bf16.msra.mxu0 0
        %1804 = vmatpush.bf16.msra.mxu0 0
        %1805 = vmatpush.bf16.msra.mxu0 0
        %1806 = vmatpush.bf16.msra.mxu0 0
        %1807 = vmatpush.bf16.msra.mxu0 0
        %1808 = vmatpush.bf16.msra.mxu0 %v1751
        %1809 = vmatpush.bf16.msra.mxu0 %v1747
        %1810 = vmatmul.bf16.gmra.mxu0 %v1761
        %v1811 = vpop.f32.mrf.mxu0
        %v1812 = vadd.f32 0.0, %v1811
        %v1813 = vpop.f32.mrf.mxu0
        %1814 = vdwg.mxu0
        %v1815 = vsub.f32 %v1669, %v1773
        %v1816 = vsub.f32 %v1682, %v1786
        %v1817 = vsub.f32 %v1695, %v1799
        %v1818 = vsub.f32 %v1708, %v1812
        %v1819 = vadd.f32 %v853, %v1815
        %v1820 = vadd.f32 %v857, %v1816
        %v1821 = vadd.f32 %v859, %v1817
        %v1822 = vadd.f32 %v861, %v1818
        %v1827 = vrot.slane %v1820, 7
        %v1828 = vrot.slane %v1821, 6
        %v1829 = vrot.slane %v1822, 5
        %v1830 = vsel %vm810, %v1819, %v1827
        %vm1831 = vcmask 1042434
        %v1832 = vsel %vm1831, %v1828, %v1829
        %v1833 = vsel %vm812, %v1830, %v1832
        %v1835 = vlaneseq
        %vm1836 = vcmp.ge.s32.totalorder %v1835, 0
        %vm1837 = vcmp.lt.s32.totalorder %v1835, 512
        %vm1838 = vmand %vm1836, %vm1837
        %1839 = vst.msk [vmem:[%s323] sm:$0xf] %vm1838, %v1833
        %s1840 = sand.u32 %s225, 1
        %s1841 = scalar_lea.sflag [#allocation3], %s1840
        %s1842 = sand.u32 %s225, 1
        %s1843 = smul.addr %s1842, 4
        %s1844 = scalar_lea.vmem [#allocation2], %s1843
        // Predicated region
        $region57: #{pr_forward.1} parent=55 // pred_check
          %p1845 = pneg %p235
        $region58: #{pr_forward.1} parent=55 // pred_check_branch
          %1847 = sbr.rel (%p1845) target = $region60
        $region59: #{pr_forward.1} parent=55 // pred_region
          %1849 = vsyncadd %s1841, 0
          %s1850 = smul.addr %s23, 4
          %s1851 = scalar_lea.hbm %s9, %s1850
          %s1853 = sshll.u32 %s1844, 4
          %s1854 = int_to_ptr.vmem [resolvable:$true] %s1853
          %s1855 = sshll.u32 %s1851, 4
          %s1856 = int_to_ptr.hbm [resolvable:$true] %s1855
          %1858 = dma.vmem_to_hbm [thread:$0]  %s1854, 64, %s1856, %s1841
        $region60: #{pr_forward.1} parent=55 // pred_fallthru
          _
      $region56: #{pr_forward.1} parent=5 // pred_fallthru
        _
      %p1859 = scmp.le.s32.totalorder 2, %s18
      // Predicated region
      $region61: #{pr_forward.1} parent=5 // pred_check
        %p1860 = pneg %p1859
      $region62: #{pr_forward.1} parent=5 // pred_check_branch
        %1862 = sbr.rel (%p1860) target = $region64
      $region63: #{pr_forward.1} parent=5 // pred_region
        %s1863 = ssub.s32 %s18, 2
        // Predicated region
        $region65: #{pr_forward.1} parent=63 // pred_check
          %p1864 = pneg %p241
        $region66: #{pr_forward.1} parent=63 // pred_check_branch
          %1866 = sbr.rel (%p1864) target = $region68
        $region67: #{pr_forward.1} parent=63 // pred_region
          %s1867 = sand.u32 %s226, 1
          %s1868 = scalar_lea.sflag [#allocation3], %s1867
          %s1869 = sand.u32 %s226, 1
          %s1870 = smul.addr %s1869, 4
          %s1871 = scalar_lea.vmem [#allocation2], %s1870
          %1873 = dma.done %s1868, 64
        $region68: #{pr_forward.1} parent=63 // pred_fallthru
          _
      $region64: #{pr_forward.1} parent=5 // pred_fallthru
        _
    $region6: #{pr_forward.1} parent=1 // loop_footer
      %s22 = sadd.s32 1, %s18
    $region7: #{pr_forward.1} parent=1 // loop_footer_branch
      %17 = sbr.rel target = $region3
    $region8: #{pr_forward.1} parent=1 // loop_exit
      _
    %1874 = vsyncpa [#allocation3], 1
    %s1875 = scalar_lea.sflag [#allocation3], 1
    %1876 = vsyncpa %s1875, 1

</llo_original>
